<compile_context>
chip_gen: v6e
topology: v6e:2x2x1
jax: 0.10.0
libtpu: 0.0.40
codegen_flags: <defaults>
</compile_context>

<pallas_src>
import jax
import jax.numpy as jnp
from jax.experimental import pallas as pl
from jax.experimental.pallas import tpu as pltpu


# Padded (lane-aligned) layer widths.
LANE = 128
H1_PAD = 512   # 400 -> 512
H2_PAD = 384   # 300 -> 384


def _round_up(x, m):
    return (x + m - 1) // m * m


# ----------------------------- Pallas kernel -------------------------------

def ddpg_actor_kernel(obs_ref, w1_ref, b1_ref, w2_ref, b2_ref, w3_ref, b3_ref,
                      out_ref):
    # Activations in f32; cast to bf16 only at the MXU inputs (f32 accumulate).
    x = obs_ref[...].astype(jnp.bfloat16)

    # h1 = ReLU(obs @ W1 + b1)
    h1 = jnp.dot(x, w1_ref[...], preferred_element_type=jnp.float32)
    h1 = jnp.maximum(h1 + b1_ref[...], 0.0)

    # h2 = ReLU(h1 @ W2 + b2)
    h2 = jnp.dot(h1.astype(jnp.bfloat16), w2_ref[...],
                 preferred_element_type=jnp.float32)
    h2 = jnp.maximum(h2 + b2_ref[...], 0.0)

    # out = Tanh(h2 @ W3 + b3)
    o = jnp.dot(h2.astype(jnp.bfloat16), w3_ref[...],
                preferred_element_type=jnp.float32)
    out_ref[...] = jnp.tanh(o + b3_ref[...])


def ddpg_actor_forward(obs, w1, b1, w2, b2, w3, b3, n_actions, btile=128):
    """obs: (B, n_obs) f32.  Weights are padded bf16 (in_pad, out_pad); biases
    padded f32 (1, out_pad).  Returns (B, n_actions) f32."""
    B, n_obs = obs.shape
    k_pad = w1.shape[0]
    out_pad = w3.shape[1]

    # Pick a batch tile: don't blow up tiny batches, cap at `btile` for big ones.
    bt = min(btile, _round_up(B, 8))
    b_pad = _round_up(B, bt)

    # Zero-pad obs to (b_pad, k_pad); zero rows/cols are exact for the matmuls.
    obs_p = jnp.zeros((b_pad, k_pad), jnp.float32).at[:B, :n_obs].set(obs)

    grid = (b_pad // bt,)
    h1p, h2p = w1.shape[1], w2.shape[1]

    out = pl.pallas_call(
        ddpg_actor_kernel,
        out_shape=jax.ShapeDtypeStruct((b_pad, out_pad), jnp.float32),
        grid_spec=pltpu.PrefetchScalarGridSpec(
            num_scalar_prefetch=0,
            grid=grid,
            in_specs=[
                pl.BlockSpec((bt, k_pad), lambda i: (i, 0)),      # obs tile
                pl.BlockSpec((k_pad, h1p), lambda i: (0, 0)),     # W1 resident
                pl.BlockSpec((1, h1p), lambda i: (0, 0)),         # b1 resident
                pl.BlockSpec((h1p, h2p), lambda i: (0, 0)),       # W2 resident
                pl.BlockSpec((1, h2p), lambda i: (0, 0)),         # b2 resident
                pl.BlockSpec((h2p, out_pad), lambda i: (0, 0)),   # W3 resident
                pl.BlockSpec((1, out_pad), lambda i: (0, 0)),     # b3 resident
            ],
            out_specs=pl.BlockSpec((bt, out_pad), lambda i: (i, 0)),
        ),
        compiler_params=pltpu.CompilerParams(
            dimension_semantics=("parallel",)),
    )(obs_p, w1, b1, w2, b2, w3, b3)

    return out[:B, :n_actions]


# ------------------------- deterministic param init ------------------------

def orthogonal_init(key, rows, cols, gain=1.0):
    """Mimics torch.nn.init.orthogonal_ (gain=1.0) for a 2-D (rows, cols) weight."""
    transpose = rows < cols
    r, c = (cols, rows) if transpose else (rows, cols)
    a = jax.random.normal(key, (r, c), dtype=jnp.float32)
    q, rr = jnp.linalg.qr(a)
    d = jnp.diagonal(rr)
    q = q * jnp.where(d >= 0.0, 1.0, -1.0)[None, :]   # robust sign (no zeroing)
    if transpose:
        q = q.T
    return gain * q  # shape (rows, cols)


def make_params(key, n_observations, n_actions):
    """Build padded, kernel-layout params.

    Weights: bf16, shape (in_pad, out_pad), zero-padded.
    Biases:  f32, shape (1, out_pad), zero in padded lanes.
    """
    k1, k2, k3, k4 = jax.random.split(key, 4)

    k_pad = _round_up(n_observations, LANE)
    out_pad = _round_up(n_actions, LANE)

    # h1: Linear(n_obs, 400), orthogonal weight (torch layout (out,in)), zero bias
    w1_t = orthogonal_init(k1, 400, n_observations)
    w1 = jnp.zeros((k_pad, H1_PAD), jnp.float32).at[:n_observations, :400].set(w1_t.T)
    b1 = jnp.zeros((1, H1_PAD), jnp.float32)

    # h2: Linear(400, 300), orthogonal weight, zero bias
    w2_t = orthogonal_init(k2, 300, 400)
    w2 = jnp.zeros((H1_PAD, H2_PAD), jnp.float32).at[:400, :300].set(w2_t.T)
    b2 = jnp.zeros((1, H2_PAD), jnp.float32)

    # out: Linear(300, n_actions), default PyTorch init (uniform +-1/sqrt(fan_in))
    bound = 1.0 / jnp.sqrt(300.0)
    w3_t = jax.random.uniform(k3, (n_actions, 300), jnp.float32, -bound, bound)
    b3_v = jax.random.uniform(k4, (n_actions,), jnp.float32, -bound, bound)
    w3 = jnp.zeros((H2_PAD, out_pad), jnp.float32).at[:300, :n_actions].set(w3_t.T)
    b3 = jnp.zeros((1, out_pad), jnp.float32).at[0, :n_actions].set(b3_v)

    # bf16 weights (DMA-bytes / MXU win on v6e/v7x); biases stay f32.
    return (w1.astype(jnp.bfloat16), b1,
            w2.astype(jnp.bfloat16), b2,
            w3.astype(jnp.bfloat16), b3)


def ref_forward(obs, w1, b1, w2, b2, w3, b3, n_actions):
    """Plain-JAX reference doing the same padded bf16-input / f32-accum math."""
    B, n_obs = obs.shape
    x = jnp.zeros((B, w1.shape[0]), jnp.float32).at[:, :n_obs].set(obs)
    h1 = jnp.maximum(jnp.dot(x.astype(jnp.bfloat16), w1,
                             preferred_element_type=jnp.float32) + b1, 0.0)
    h2 = jnp.maximum(jnp.dot(h1.astype(jnp.bfloat16), w2,
                             preferred_element_type=jnp.float32) + b2, 0.0)
    o = jnp.tanh(jnp.dot(h2.astype(jnp.bfloat16), w3,
                         preferred_element_type=jnp.float32) + b3)
    return o[:, :n_actions]


# --------------------------------- main -------------------------------------

if __name__ == "__main__":
    n_observations = 16   # observation_space.shape[0]
    n_actions = 8         # action_space.shape[0]
    batch = 256           # amortizes fixed per-call cost; exercises a 2-step grid

    key = jax.random.PRNGKey(0)
    kp, kx = jax.random.split(key)

    w1, b1, w2, b2, w3, b3 = make_params(kp, n_observations, n_actions)
    obs = jax.random.normal(kx, (batch, n_observations), dtype=jnp.float32)

    out = ddpg_actor_forward(obs, w1, b1, w2, b2, w3, b3, n_actions)
    out = jax.block_until_ready(out)

    ref = ref_forward(obs, w1, b1, w2, b2, w3, b3, n_actions)
    assert out.shape == (batch, n_actions)
    assert jnp.allclose(out, ref, atol=2e-3, rtol=2e-3), float(
        jnp.max(jnp.abs(out - ref)))

    print("KERNEL_OK")
</pallas_src>

<mosaic_0001>
module attributes {stable_mosaic.version = 11 : i64} {
  func.func @ddpg_actor_kernel(%arg0: i32, %arg1: memref<128x128xf32, #tpu.memory_space<vmem>>, %arg2: memref<128x512xbf16, #tpu.memory_space<vmem>>, %arg3: memref<1x512xf32, #tpu.memory_space<vmem>>, %arg4: memref<512x384xbf16, #tpu.memory_space<vmem>>, %arg5: memref<1x384xf32, #tpu.memory_space<vmem>>, %arg6: memref<384x128xbf16, #tpu.memory_space<vmem>>, %arg7: memref<1x128xf32, #tpu.memory_space<vmem>>, %arg8: memref<128x128xf32, #tpu.memory_space<vmem>>) attributes {dimension_semantics = [#tpu.dimension_semantics<parallel>], iteration_bounds = array<i64: 2>, scalar_prefetch = 0 : i64, scratch_operands = 0 : i64, tpu.core_type = #tpu.core_type<tc>, window_params = [{transform_indices = @transform_0, window_bounds = array<i64: 128, 128>}, {pipeline_mode = #tpu.pipeline_mode<synchronous>, transform_indices = @transform_1, window_bounds = array<i64: 128, 512>}, {pipeline_mode = #tpu.pipeline_mode<synchronous>, transform_indices = @transform_2, window_bounds = array<i64: 1, 512>}, {pipeline_mode = #tpu.pipeline_mode<synchronous>, transform_indices = @transform_3, window_bounds = array<i64: 512, 384>}, {pipeline_mode = #tpu.pipeline_mode<synchronous>, transform_indices = @transform_4, window_bounds = array<i64: 1, 384>}, {pipeline_mode = #tpu.pipeline_mode<synchronous>, transform_indices = @transform_5, window_bounds = array<i64: 384, 128>}, {pipeline_mode = #tpu.pipeline_mode<synchronous>, transform_indices = @transform_6, window_bounds = array<i64: 1, 128>}, {transform_indices = @transform_7, window_bounds = array<i64: 128, 128>}]} {
    %c0 = arith.constant 0 : index
    %c0_0 = arith.constant 0 : index
    %0 = vector.load %arg1[%c0, %c0_0] : memref<128x128xf32, #tpu.memory_space<vmem>>, vector<128x128xf32>
    %1 = arith.truncf %0 : vector<128x128xf32> to vector<128x128xbf16>
    %c0_1 = arith.constant 0 : index
    %c0_2 = arith.constant 0 : index
    %2 = vector.load %arg2[%c0_1, %c0_2] : memref<128x512xbf16, #tpu.memory_space<vmem>>, vector<128x512xbf16>
    %cst = arith.constant dense<0.000000e+00> : vector<128x512xf32>
    %3 = tpu.matmul %1, %2, %cst {dimension_numbers = #tpu.dot_dimension_numbers<[1], [0], [0], [1], [0, 0, 1, 1], [], []>} : vector<128x128xbf16>, vector<128x512xbf16>, vector<128x512xf32> -> vector<128x512xf32>
    %c0_3 = arith.constant 0 : index
    %c0_4 = arith.constant 0 : index
    %4 = vector.load %arg3[%c0_3, %c0_4] : memref<1x512xf32, #tpu.memory_space<vmem>>, vector<1x512xf32>
    %5 = vector.broadcast %4 : vector<1x512xf32> to vector<128x512xf32>
    %6 = arith.addf %3, %5 : vector<128x512xf32>
    %cst_5 = arith.constant 0.000000e+00 : f32
    %7 = vector.broadcast %cst_5 : f32 to vector<128x512xf32>
    %8 = arith.maximumf %6, %7 : vector<128x512xf32>
    %9 = arith.truncf %8 : vector<128x512xf32> to vector<128x512xbf16>
    %c0_6 = arith.constant 0 : index
    %c0_7 = arith.constant 0 : index
    %10 = vector.load %arg4[%c0_6, %c0_7] : memref<512x384xbf16, #tpu.memory_space<vmem>>, vector<512x384xbf16>
    %cst_8 = arith.constant dense<0.000000e+00> : vector<128x384xf32>
    %11 = tpu.matmul %9, %10, %cst_8 {dimension_numbers = #tpu.dot_dimension_numbers<[1], [0], [0], [1], [0, 0, 1, 1], [], []>} : vector<128x512xbf16>, vector<512x384xbf16>, vector<128x384xf32> -> vector<128x384xf32>
    %c0_9 = arith.constant 0 : index
    %c0_10 = arith.constant 0 : index
    %12 = vector.load %arg5[%c0_9, %c0_10] : memref<1x384xf32, #tpu.memory_space<vmem>>, vector<1x384xf32>
    %13 = vector.broadcast %12 : vector<1x384xf32> to vector<128x384xf32>
    %14 = arith.addf %11, %13 : vector<128x384xf32>
    %cst_11 = arith.constant 0.000000e+00 : f32
    %15 = vector.broadcast %cst_11 : f32 to vector<128x384xf32>
    %16 = arith.maximumf %14, %15 : vector<128x384xf32>
    %17 = arith.truncf %16 : vector<128x384xf32> to vector<128x384xbf16>
    %c0_12 = arith.constant 0 : index
    %c0_13 = arith.constant 0 : index
    %18 = vector.load %arg6[%c0_12, %c0_13] : memref<384x128xbf16, #tpu.memory_space<vmem>>, vector<384x128xbf16>
    %cst_14 = arith.constant dense<0.000000e+00> : vector<128x128xf32>
    %19 = tpu.matmul %17, %18, %cst_14 {dimension_numbers = #tpu.dot_dimension_numbers<[1], [0], [0], [1], [0, 0, 1, 1], [], []>} : vector<128x384xbf16>, vector<384x128xbf16>, vector<128x128xf32> -> vector<128x128xf32>
    %c0_15 = arith.constant 0 : index
    %c0_16 = arith.constant 0 : index
    %20 = vector.load %arg7[%c0_15, %c0_16] : memref<1x128xf32, #tpu.memory_space<vmem>>, vector<1x128xf32>
    %21 = vector.broadcast %20 : vector<1x128xf32> to vector<128x128xf32>
    %22 = arith.addf %19, %21 : vector<128x128xf32>
    %23 = math.tanh %22 : vector<128x128xf32>
    %c0_17 = arith.constant 0 : index
    %c0_18 = arith.constant 0 : index
    %24 = vector.load %arg8[%c0_17, %c0_18] : memref<128x128xf32, #tpu.memory_space<vmem>>, vector<128x128xf32>
    tpu.vector_store %arg8[%c0_17, %c0_18], %23 {strides = array<i32>} : memref<128x128xf32, #tpu.memory_space<vmem>>, vector<128x128xf32>,
    return
  }
  func.func @transform_0(%arg0: i32) -> (i32, i32) {
    %c0_i32 = arith.constant 0 : i32
    %c0_i32_0 = arith.constant 0 : i32
    return %arg0, %c0_i32 : i32, i32
  }
  func.func @transform_1(%arg0: i32) -> (i32, i32) {
    %c0_i32 = arith.constant 0 : i32
    %c0_i32_0 = arith.constant 0 : i32
    %c0_i32_1 = arith.constant 0 : i32
    return %c0_i32, %c0_i32_0 : i32, i32
  }
  func.func @transform_2(%arg0: i32) -> (i32, i32) {
    %c0_i32 = arith.constant 0 : i32
    %c0_i32_0 = arith.constant 0 : i32
    %c0_i32_1 = arith.constant 0 : i32
    return %c0_i32, %c0_i32_0 : i32, i32
  }
  func.func @transform_3(%arg0: i32) -> (i32, i32) {
    %c0_i32 = arith.constant 0 : i32
    %c0_i32_0 = arith.constant 0 : i32
    %c0_i32_1 = arith.constant 0 : i32
    return %c0_i32, %c0_i32_0 : i32, i32
  }
  func.func @transform_4(%arg0: i32) -> (i32, i32) {
    %c0_i32 = arith.constant 0 : i32
    %c0_i32_0 = arith.constant 0 : i32
    %c0_i32_1 = arith.constant 0 : i32
    return %c0_i32, %c0_i32_0 : i32, i32
  }
  func.func @transform_5(%arg0: i32) -> (i32, i32) {
    %c0_i32 = arith.constant 0 : i32
    %c0_i32_0 = arith.constant 0 : i32
    %c0_i32_1 = arith.constant 0 : i32
    return %c0_i32, %c0_i32_0 : i32, i32
  }
  func.func @transform_6(%arg0: i32) -> (i32, i32) {
    %c0_i32 = arith.constant 0 : i32
    %c0_i32_0 = arith.constant 0 : i32
    %c0_i32_1 = arith.constant 0 : i32
    return %c0_i32, %c0_i32_0 : i32, i32
  }
  func.func @transform_7(%arg0: i32) -> (i32, i32) {
    %c0_i32 = arith.constant 0 : i32
    %c0_i32_0 = arith.constant 0 : i32
    return %arg0, %c0_i32 : i32, i32
  }
}

</mosaic_0001>

<llo_original>
// kernel: tpu_custom_call.1
$region0: #{tpu_custom_call.1}
  #allocation0 [shape = 'u32[]', space=smem, size = 0x4, offset = 0x4, fixed_abs, tag = 'smem constant byte address 0x4 - core index']
  #allocation1 [shape = 'u32[144,128]{1,0:T(1,128)}', space=vmem, size = 0x12000, scoped, tag = 'internal scratch']
  %s0 = inlined_call_operand.hbm [shape: f32[256,128], index: 0, kind: input, shape index: {}]
  %s1 = inlined_call_operand.hbm [shape: bf16[128,512], index: 1, kind: input, shape index: {}]
  %s2 = inlined_call_operand.hbm [shape: f32[1,512], index: 2, kind: input, shape index: {}]
  %s3 = inlined_call_operand.hbm [shape: bf16[512,384], index: 3, kind: input, shape index: {}]
  %s4 = inlined_call_operand.vmem [shape: f32[1,384], index: 4, kind: input, shape index: {}]
  %s5 = inlined_call_operand.hbm [shape: bf16[384,128], index: 5, kind: input, shape index: {}]
  %s6 = inlined_call_operand.vmem [shape: f32[1,128], index: 6, kind: input, shape index: {}]
  %s7 = inlined_call_operand.hbm [shape: f32[256,128], index: 7, kind: output, shape index: {}]
  %s8 = sld [smem:[#allocation0]]
  $region81: #{tpu_custom_call.1} parent=0
    _
  %s10 = ssub.s32 1, %s8
  %s11 = scalar_select 0, %s10, %s8
  $region1: #{tpu_custom_call.1} parent=0
    #allocation2 [shape = 'u8[131072]{0}', space=vmem, size = 0x20000, scoped, tag = 'input window, operand 0']
    #allocation3 [shape = 's32[2]{0}', space=sflag, size = 0x8, scoped, tag = 'scoped memory for tpu_custom_call.1']
    #allocation4 [shape = 's32[2]{0}', space=sflag, size = 0x8, scoped, tag = 'scoped memory for tpu_custom_call.1']
    #allocation5 [shape = 'u8[131072]{0}', space=vmem, size = 0x20000, scoped, tag = 'input window, operand 1, single buffered']
    #allocation6 [shape = 's32[1]{0}', space=sflag, size = 0x4, scoped, tag = 'scoped memory for tpu_custom_call.1']
    #allocation7 [shape = 'u8[2048]{0}', space=vmem, size = 0x800, scoped, tag = 'input window, operand 2, single buffered']
    #allocation8 [shape = 'u8[393216]{0}', space=vmem, size = 0x60000, scoped, tag = 'input window, operand 3, single buffered']
    #allocation9 [shape = 's32[1]{0}', space=sflag, size = 0x4, scoped, tag = 'scoped memory for tpu_custom_call.1']
    #allocation10 [shape = 'u8[98304]{0}', space=vmem, size = 0x18000, scoped, tag = 'input window, operand 5, single buffered']
    #allocation11 [shape = 'u8[131072]{0}', space=vmem, size = 0x20000, scoped, tag = 'output window, operand 0']
    %12 = vsyncpa [#allocation3], 0
    %s13 = scalar_lea.sflag [#allocation3], 1
    %14 = vsyncpa %s13, 0
    %15 = vsyncpa [#allocation6], 0
    %16 = vsyncpa [#allocation9], 0
    %17 = vsyncpa [#allocation4], 0
    %s18 = scalar_lea.sflag [#allocation4], 1
    %19 = vsyncpa %s18, 0
    loop: start=0, step=1, limit=4
    $region2: #{tpu_custom_call.1} parent=1 // loop_pre_header
      _
    $region3: #{tpu_custom_call.1} parent=1 // loop_header
      %s21 = sphi 0, %s25
      %p22 = scmp.ge.s32.totalorder %s21, 4
      %s31 = sphi 0, %s33
      %s34 = sphi 0, %s31
      %s35 = sphi 0, %s34
      %s51 = sphi 0, %s35
      %s55 = sphi 0, %s55
      %s57 = sphi 0, %s55
      %s58 = sphi 0, %s57
      %s72 = sphi 0, %s58
      %s76 = sphi 0, %s76
      %s78 = sphi 0, %s76
      %s79 = sphi 0, %s78
      %s93 = sphi 0, %s79
      %s97 = sphi 0, %s97
      %s99 = sphi 0, %s97
      %s100 = sphi 0, %s99
      %s114 = sphi 0, %s100
      %s118 = sphi 0, %s118
      %s120 = sphi 0, %s118
      %s121 = sphi 0, %s120
      %s135 = sphi 0, %s121
      %s139 = sphi 0, %s139
      %s141 = sphi 0, %s139
      %s142 = sphi 0, %s141
      %s156 = sphi 0, %s142
      %s160 = sphi 0, %s160
      %s162 = sphi 0, %s160
      %s163 = sphi 0, %s162
      %s177 = sphi 0, %s163
      %s183 = sphi 0, %s185
      %s186 = sphi 0, %s183
      %s187 = sphi 0, %s186
      %s203 = sphi 0, %s187
    $region4: #{tpu_custom_call.1} parent=1 // loop_header_branch
      %24 = sbr.rel (%p22) target = $region8
    $region5: #{tpu_custom_call.1} parent=1 // loop_body
      %s26 = ssub.s32 %s21, 1
      %s27 = ssub.s32 %s21, 2
      %s28 = sadd.s32 %s21, 1
      %s29 = ssub.s32 %s21, %s28
      %p30 = scmp.eq.s32.totalorder %s29, 0
      %s32 = sadd.s32 %s31, 1
      %s33 = scalar_select %p30, %s31, %s32
      %p36 = pneg %p30
      %p37 = scmp.eq.s32.totalorder %s21, 1
      %p38 = por %p36, %p37
      %p39 = scmp.ne.s32.totalorder %s31, %s34
      %p40 = scmp.eq.s32.totalorder %s21, 0
      %p41 = por %p39, %p40
      %p42 = scmp.ne.s32.totalorder %s31, %s34
      %p43 = scmp.eq.s32.totalorder %s26, 1
      %p44 = por %p42, %p43
      %p45 = scmp.ne.s32.totalorder %s34, %s35
      %p46 = scmp.eq.s32.totalorder %s26, 0
      %p47 = por %p45, %p46
      %p48 = scmp.ne.s32.totalorder %s34, %s35
      %p49 = scmp.eq.s32.totalorder %s27, 1
      %p50 = por %p48, %p49
      %p52 = scmp.ne.s32.totalorder %s35, %s51
      %p53 = scmp.eq.s32.totalorder %s27, 0
      %p54 = por %p52, %p53
      %s56 = sadd.s32 %s55, 1
      %p59 = scmp.eq.s32.totalorder %s21, 1
      %p60 = scmp.ne.s32.totalorder %s55, %s57
      %p61 = scmp.eq.s32.totalorder %s21, 0
      %p62 = por %p60, %p61
      %p63 = scmp.ne.s32.totalorder %s55, %s57
      %p64 = scmp.eq.s32.totalorder %s26, 1
      %p65 = por %p63, %p64
      %p66 = scmp.ne.s32.totalorder %s57, %s58
      %p67 = scmp.eq.s32.totalorder %s26, 0
      %p68 = por %p66, %p67
      %p69 = scmp.ne.s32.totalorder %s57, %s58
      %p70 = scmp.eq.s32.totalorder %s27, 1
      %p71 = por %p69, %p70
      %p73 = scmp.ne.s32.totalorder %s58, %s72
      %p74 = scmp.eq.s32.totalorder %s27, 0
      %p75 = por %p73, %p74
      %s77 = sadd.s32 %s76, 1
      %p80 = scmp.eq.s32.totalorder %s21, 1
      %p81 = scmp.ne.s32.totalorder %s76, %s78
      %p82 = scmp.eq.s32.totalorder %s21, 0
      %p83 = por %p81, %p82
      %p84 = scmp.ne.s32.totalorder %s76, %s78
      %p85 = scmp.eq.s32.totalorder %s26, 1
      %p86 = por %p84, %p85
      %p87 = scmp.ne.s32.totalorder %s78, %s79
      %p88 = scmp.eq.s32.totalorder %s26, 0
      %p89 = por %p87, %p88
      %p90 = scmp.ne.s32.totalorder %s78, %s79
      %p91 = scmp.eq.s32.totalorder %s27, 1
      %p92 = por %p90, %p91
      %p94 = scmp.ne.s32.totalorder %s79, %s93
      %p95 = scmp.eq.s32.totalorder %s27, 0
      %p96 = por %p94, %p95
      %s98 = sadd.s32 %s97, 1
      %p101 = scmp.eq.s32.totalorder %s21, 1
      %p102 = scmp.ne.s32.totalorder %s97, %s99
      %p103 = scmp.eq.s32.totalorder %s21, 0
      %p104 = por %p102, %p103
      %p105 = scmp.ne.s32.totalorder %s97, %s99
      %p106 = scmp.eq.s32.totalorder %s26, 1
      %p107 = por %p105, %p106
      %p108 = scmp.ne.s32.totalorder %s99, %s100
      %p109 = scmp.eq.s32.totalorder %s26, 0
      %p110 = por %p108, %p109
      %p111 = scmp.ne.s32.totalorder %s99, %s100
      %p112 = scmp.eq.s32.totalorder %s27, 1
      %p113 = por %p111, %p112
      %p115 = scmp.ne.s32.totalorder %s100, %s114
      %p116 = scmp.eq.s32.totalorder %s27, 0
      %p117 = por %p115, %p116
      %s119 = sadd.s32 %s118, 1
      %p122 = scmp.eq.s32.totalorder %s21, 1
      %p123 = scmp.ne.s32.totalorder %s118, %s120
      %p124 = scmp.eq.s32.totalorder %s21, 0
      %p125 = por %p123, %p124
      %p126 = scmp.ne.s32.totalorder %s118, %s120
      %p127 = scmp.eq.s32.totalorder %s26, 1
      %p128 = por %p126, %p127
      %p129 = scmp.ne.s32.totalorder %s120, %s121
      %p130 = scmp.eq.s32.totalorder %s26, 0
      %p131 = por %p129, %p130
      %p132 = scmp.ne.s32.totalorder %s120, %s121
      %p133 = scmp.eq.s32.totalorder %s27, 1
      %p134 = por %p132, %p133
      %p136 = scmp.ne.s32.totalorder %s121, %s135
      %p137 = scmp.eq.s32.totalorder %s27, 0
      %p138 = por %p136, %p137
      %s140 = sadd.s32 %s139, 1
      %p143 = scmp.eq.s32.totalorder %s21, 1
      %p144 = scmp.ne.s32.totalorder %s139, %s141
      %p145 = scmp.eq.s32.totalorder %s21, 0
      %p146 = por %p144, %p145
      %p147 = scmp.ne.s32.totalorder %s139, %s141
      %p148 = scmp.eq.s32.totalorder %s26, 1
      %p149 = por %p147, %p148
      %p150 = scmp.ne.s32.totalorder %s141, %s142
      %p151 = scmp.eq.s32.totalorder %s26, 0
      %p152 = por %p150, %p151
      %p153 = scmp.ne.s32.totalorder %s141, %s142
      %p154 = scmp.eq.s32.totalorder %s27, 1
      %p155 = por %p153, %p154
      %p157 = scmp.ne.s32.totalorder %s142, %s156
      %p158 = scmp.eq.s32.totalorder %s27, 0
      %p159 = por %p157, %p158
      %s161 = sadd.s32 %s160, 1
      %p164 = scmp.eq.s32.totalorder %s21, 1
      %p165 = scmp.ne.s32.totalorder %s160, %s162
      %p166 = scmp.eq.s32.totalorder %s21, 0
      %p167 = por %p165, %p166
      %p168 = scmp.ne.s32.totalorder %s160, %s162
      %p169 = scmp.eq.s32.totalorder %s26, 1
      %p170 = por %p168, %p169
      %p171 = scmp.ne.s32.totalorder %s162, %s163
      %p172 = scmp.eq.s32.totalorder %s26, 0
      %p173 = por %p171, %p172
      %p174 = scmp.ne.s32.totalorder %s162, %s163
      %p175 = scmp.eq.s32.totalorder %s27, 1
      %p176 = por %p174, %p175
      %p178 = scmp.ne.s32.totalorder %s163, %s177
      %p179 = scmp.eq.s32.totalorder %s27, 0
      %p180 = por %p178, %p179
      %s181 = ssub.s32 %s21, %s28
      %p182 = scmp.eq.s32.totalorder %s181, 0
      %s184 = sadd.s32 %s183, 1
      %s185 = scalar_select %p182, %s183, %s184
      %p188 = pneg %p182
      %p189 = scmp.eq.s32.totalorder %s21, 1
      %p190 = por %p188, %p189
      %p191 = scmp.ne.s32.totalorder %s183, %s186
      %p192 = scmp.eq.s32.totalorder %s21, 0
      %p193 = por %p191, %p192
      %p194 = scmp.ne.s32.totalorder %s183, %s186
      %p195 = scmp.eq.s32.totalorder %s26, 1
      %p196 = por %p194, %p195
      %p197 = scmp.ne.s32.totalorder %s186, %s187
      %p198 = scmp.eq.s32.totalorder %s26, 0
      %p199 = por %p197, %p198
      %p200 = scmp.ne.s32.totalorder %s186, %s187
      %p201 = scmp.eq.s32.totalorder %s27, 1
      %p202 = por %p200, %p201
      %p204 = scmp.ne.s32.totalorder %s187, %s203
      %p205 = scmp.eq.s32.totalorder %s27, 0
      %p206 = por %p204, %p205
      %p207 = scmp.le.s32.totalorder 1, %s21
      %p208 = scmp.lt.s32.totalorder %s21, 3
      %p209 = pnand %p207, %p208
      %p210 = pneg %p209
      // Predicated region
      $region9: #{tpu_custom_call.1} parent=5 // pred_check
        _
      $region10: #{tpu_custom_call.1} parent=5 // pred_check_branch
        %212 = sbr.rel (%p209) target = $region12
      $region11: #{tpu_custom_call.1} parent=5 // pred_region
        %s213 = ssub.s32 %s21, 1
        // Predicated region
        $region13: #{tpu_custom_call.1} parent=11 // pred_check
          %p214 = pneg %p68
        $region14: #{tpu_custom_call.1} parent=11 // pred_check_branch
          %216 = sbr.rel (%p214) target = $region16
        $region15: #{tpu_custom_call.1} parent=11 // pred_region
          %s218 = ssub.s32 4096, 4096
          %219 = vsyncadd [#allocation6], %s218
          %s220 = sshll.u32 [#allocation5], 4
          %s221 = int_to_ptr.vmem [resolvable:$true] %s220
          %226 = dma.hbm_to_vmem [thread:$0]  %s1, 4096, %s221, [#allocation6], 256, 256, 16
        $region16: #{tpu_custom_call.1} parent=11 // pred_fallthru
          _
        // Predicated region
        $region17: #{tpu_custom_call.1} parent=11 // pred_check
          %p227 = pneg %p89
        $region18: #{tpu_custom_call.1} parent=11 // pred_check_branch
          %229 = sbr.rel (%p227) target = $region20
        $region19: #{tpu_custom_call.1} parent=11 // pred_region
          %s231 = ssub.s32 64, 64
          %232 = vsyncadd [#allocation6], %s231
          %s234 = sshll.u32 [#allocation7], 4
          %s235 = int_to_ptr.vmem [resolvable:$true] %s234
          %237 = dma.hbm_to_vmem [thread:$0]  %s2, 64, %s235, [#allocation6]
        $region20: #{tpu_custom_call.1} parent=11 // pred_fallthru
          _
        // Predicated region
        $region21: #{tpu_custom_call.1} parent=11 // pred_check
          %p238 = pneg %p110
        $region22: #{tpu_custom_call.1} parent=11 // pred_check_branch
          %240 = sbr.rel (%p238) target = $region24
        $region23: #{tpu_custom_call.1} parent=11 // pred_region
          %s242 = ssub.s32 12288, 12288
          %243 = vsyncadd [#allocation9], %s242
          %s244 = sshll.u32 [#allocation8], 4
          %s245 = int_to_ptr.vmem [resolvable:$true] %s244
          %250 = dma.hbm_to_vmem [thread:$0]  %s3, 12288, %s245, [#allocation9], 192, 192, 12
        $region24: #{tpu_custom_call.1} parent=11 // pred_fallthru
          _
        // Predicated region
        $region25: #{tpu_custom_call.1} parent=11 // pred_check
          %p251 = pneg %p131
        $region26: #{tpu_custom_call.1} parent=11 // pred_check_branch
          %253 = sbr.rel (%p251) target = $region28
        $region27: #{tpu_custom_call.1} parent=11 // pred_region
          _
        $region28: #{tpu_custom_call.1} parent=11 // pred_fallthru
          _
        // Predicated region
        $region29: #{tpu_custom_call.1} parent=11 // pred_check
          %p254 = pneg %p152
        $region30: #{tpu_custom_call.1} parent=11 // pred_check_branch
          %256 = sbr.rel (%p254) target = $region32
        $region31: #{tpu_custom_call.1} parent=11 // pred_region
          %s258 = ssub.s32 3072, 3072
          %259 = vsyncadd [#allocation9], %s258
          %s260 = sshll.u32 [#allocation10], 4
          %s261 = int_to_ptr.vmem [resolvable:$true] %s260
          %266 = dma.hbm_to_vmem [thread:$0]  %s5, 3072, %s261, [#allocation9], 64, 64, 4
        $region32: #{tpu_custom_call.1} parent=11 // pred_fallthru
          _
        // Predicated region
        $region33: #{tpu_custom_call.1} parent=11 // pred_check
          %p267 = pneg %p173
        $region34: #{tpu_custom_call.1} parent=11 // pred_check_branch
          %269 = sbr.rel (%p267) target = $region36
        $region35: #{tpu_custom_call.1} parent=11 // pred_region
          _
        $region36: #{tpu_custom_call.1} parent=11 // pred_fallthru
          _
      $region12: #{tpu_custom_call.1} parent=5 // pred_fallthru
        _
      %p270 = scmp.lt.s32.totalorder %s21, 2
      // Predicated region
      $region37: #{tpu_custom_call.1} parent=5 // pred_check
        %p271 = pneg %p270
      $region38: #{tpu_custom_call.1} parent=5 // pred_check_branch
        %273 = sbr.rel (%p271) target = $region40
      $region39: #{tpu_custom_call.1} parent=5 // pred_region
        // Predicated region
        $region41: #{tpu_custom_call.1} parent=39 // pred_check
          %p274 = pneg %p41
        $region42: #{tpu_custom_call.1} parent=39 // pred_check_branch
          %276 = sbr.rel (%p274) target = $region44
        $region43: #{tpu_custom_call.1} parent=39 // pred_region
          %s277 = sand.u32 %s31, 1
          %s278 = scalar_lea.sflag [#allocation3], %s277
          %s279 = sand.u32 %s31, 1
          %s280 = smul.addr %s279, 128
          %s281 = scalar_lea.vmem [#allocation2], %s280
          %s282 = smul.u32 16, %s21
          %s284 = ssub.s32 2048, 2048
          %285 = vsyncadd %s278, %s284
          %s286 = smul.addr %s282, 128
          %s287 = scalar_lea.hbm %s0, %s286
          %s288 = sshll.u32 %s281, 4
          %s289 = int_to_ptr.vmem [resolvable:$true] %s288
          %294 = dma.hbm_to_vmem [thread:$0]  %s287, 2048, %s289, %s278, 128, 128, 8
        $region44: #{tpu_custom_call.1} parent=39 // pred_fallthru
          _
      $region40: #{tpu_custom_call.1} parent=5 // pred_fallthru
        _
      %p295 = scmp.le.s32.totalorder 1, %s21
      %p296 = scmp.lt.s32.totalorder %s21, 3
      %p297 = pnand %p295, %p296
      %p298 = pneg %p297
      // Predicated region
      $region45: #{tpu_custom_call.1} parent=5 // pred_check
        _
      $region46: #{tpu_custom_call.1} parent=5 // pred_check_branch
        %300 = sbr.rel (%p297) target = $region48
      $region47: #{tpu_custom_call.1} parent=5 // pred_region
        %s301 = ssub.s32 %s21, 1
        %s302 = sand.u32 %s34, 1
        %s303 = scalar_lea.sflag [#allocation3], %s302
        %s304 = sand.u32 %s34, 1
        %s305 = smul.addr %s304, 128
        %s306 = scalar_lea.vmem [#allocation2], %s305
        // Predicated region
        $region49: #{tpu_custom_call.1} parent=47 // pred_check
          %p307 = pneg %p47
        $region50: #{tpu_custom_call.1} parent=47 // pred_check_branch
          %309 = sbr.rel (%p307) target = $region52
        $region51: #{tpu_custom_call.1} parent=47 // pred_region
          %310 = dma.done %s303, 2048
        $region52: #{tpu_custom_call.1} parent=47 // pred_fallthru
          _
        // Predicated region
        $region53: #{tpu_custom_call.1} parent=47 // pred_check
          %p311 = pneg %p68
        $region54: #{tpu_custom_call.1} parent=47 // pred_check_branch
          %313 = sbr.rel (%p311) target = $region56
        $region55: #{tpu_custom_call.1} parent=47 // pred_region
          %314 = dma.done [#allocation6], 4096
        $region56: #{tpu_custom_call.1} parent=47 // pred_fallthru
          _
        // Predicated region
        $region57: #{tpu_custom_call.1} parent=47 // pred_check
          %p315 = pneg %p89
        $region58: #{tpu_custom_call.1} parent=47 // pred_check_branch
          %317 = sbr.rel (%p315) target = $region60
        $region59: #{tpu_custom_call.1} parent=47 // pred_region
          %318 = dma.done [#allocation6], 64
        $region60: #{tpu_custom_call.1} parent=47 // pred_fallthru
          _
        // Predicated region
        $region61: #{tpu_custom_call.1} parent=47 // pred_check
          %p319 = pneg %p110
        $region62: #{tpu_custom_call.1} parent=47 // pred_check_branch
          %321 = sbr.rel (%p319) target = $region64
        $region63: #{tpu_custom_call.1} parent=47 // pred_region
          %322 = dma.done [#allocation9], 12288
        $region64: #{tpu_custom_call.1} parent=47 // pred_fallthru
          _
        // Predicated region
        $region65: #{tpu_custom_call.1} parent=47 // pred_check
          %p323 = pneg %p152
        $region66: #{tpu_custom_call.1} parent=47 // pred_check_branch
          %325 = sbr.rel (%p323) target = $region68
        $region67: #{tpu_custom_call.1} parent=47 // pred_region
          %326 = dma.done [#allocation9], 3072
        $region68: #{tpu_custom_call.1} parent=47 // pred_fallthru
          _
        %s327 = sand.u32 %s34, 1
        %s328 = scalar_lea.sflag [#allocation3], %s327
        %s329 = sand.u32 %s34, 1
        %s330 = smul.addr %s329, 128
        %s331 = scalar_lea.vmem [#allocation2], %s330
        %p332 = pneg %p47
        %p333 = pneg %p44
        %p334 = pneg %p68
        %p335 = pneg %p65
        %p336 = pneg %p89
        %p337 = pneg %p86
        %p338 = pneg %p110
        %p339 = pneg %p107
        %p340 = pneg %p131
        %p341 = pneg %p128
        %p342 = pneg %p152
        %p343 = pneg %p149
        %p344 = pneg %p173
        %p345 = pneg %p170
        %p346 = pneg %p199
        %p347 = pneg %p196
        %s348 = sand.u32 %s186, 1
        %s349 = scalar_lea.sflag [#allocation4], %s348
        %s350 = sand.u32 %s186, 1
        %s351 = smul.addr %s350, 128
        %s352 = scalar_lea.vmem [#allocation11], %s351
        %s353 = smul.u32 16, %s26
        %s354 = smul.u32 16, %s26
        %v356 = vld [vmem:[%s306] sm:$0xff]
        %v357 = vld [vmem:[%s306 + $0x8] sm:$0xff]
        %v358 = vld [vmem:[%s306 + $0x10] sm:$0xff]
        %v359 = vld [vmem:[%s306 + $0x18] sm:$0xff]
        %v360 = vld [vmem:[%s306 + $0x20] sm:$0xff]
        %v361 = vld [vmem:[%s306 + $0x28] sm:$0xff]
        %v362 = vld [vmem:[%s306 + $0x30] sm:$0xff]
        %v363 = vld [vmem:[%s306 + $0x38] sm:$0xff]
        %v364 = vld [vmem:[%s306 + $0x40] sm:$0xff]
        %v365 = vld [vmem:[%s306 + $0x48] sm:$0xff]
        %v366 = vld [vmem:[%s306 + $0x50] sm:$0xff]
        %v367 = vld [vmem:[%s306 + $0x58] sm:$0xff]
        %v368 = vld [vmem:[%s306 + $0x60] sm:$0xff]
        %v369 = vld [vmem:[%s306 + $0x68] sm:$0xff]
        %v370 = vld [vmem:[%s306 + $0x70] sm:$0xff]
        %v371 = vld [vmem:[%s306 + $0x78] sm:$0xff]
        %v372 = vpack.c.bf16 %v357, %v356
        %v373 = vpack.c.bf16 %v359, %v358
        %v374 = vpack.c.bf16 %v361, %v360
        %v375 = vpack.c.bf16 %v363, %v362
        %v376 = vpack.c.bf16 %v365, %v364
        %v377 = vpack.c.bf16 %v367, %v366
        %v378 = vpack.c.bf16 %v369, %v368
        %v379 = vpack.c.bf16 %v371, %v370
        %v380 = vld [vmem:[#allocation5] sm:$0xff]
        %v381 = vld [vmem:[#allocation5 + $0x8] sm:$0xff]
        %v382 = vld [vmem:[#allocation5 + $0x10] sm:$0xff]
        %v383 = vld [vmem:[#allocation5 + $0x18] sm:$0xff]
        %v384 = vld [vmem:[#allocation5 + $0x20] sm:$0xff]
        %v385 = vld [vmem:[#allocation5 + $0x28] sm:$0xff]
        %v386 = vld [vmem:[#allocation5 + $0x30] sm:$0xff]
        %v387 = vld [vmem:[#allocation5 + $0x38] sm:$0xff]
        %v388 = vld [vmem:[#allocation5 + $0x40] sm:$0xff]
        %v389 = vld [vmem:[#allocation5 + $0x48] sm:$0xff]
        %v390 = vld [vmem:[#allocation5 + $0x50] sm:$0xff]
        %v391 = vld [vmem:[#allocation5 + $0x58] sm:$0xff]
        %v392 = vld [vmem:[#allocation5 + $0x60] sm:$0xff]
        %v393 = vld [vmem:[#allocation5 + $0x68] sm:$0xff]
        %v394 = vld [vmem:[#allocation5 + $0x70] sm:$0xff]
        %v395 = vld [vmem:[#allocation5 + $0x78] sm:$0xff]
        %v396 = vld [vmem:[#allocation5 + $0x80] sm:$0xff]
        %v397 = vld [vmem:[#allocation5 + $0x88] sm:$0xff]
        %v398 = vld [vmem:[#allocation5 + $0x90] sm:$0xff]
        %v399 = vld [vmem:[#allocation5 + $0x98] sm:$0xff]
        %v400 = vld [vmem:[#allocation5 + $0xa0] sm:$0xff]
        %v401 = vld [vmem:[#allocation5 + $0xa8] sm:$0xff]
        %v402 = vld [vmem:[#allocation5 + $0xb0] sm:$0xff]
        %v403 = vld [vmem:[#allocation5 + $0xb8] sm:$0xff]
        %v404 = vld [vmem:[#allocation5 + $0xc0] sm:$0xff]
        %v405 = vld [vmem:[#allocation5 + $0xc8] sm:$0xff]
        %v406 = vld [vmem:[#allocation5 + $0xd0] sm:$0xff]
        %v407 = vld [vmem:[#allocation5 + $0xd8] sm:$0xff]
        %v408 = vld [vmem:[#allocation5 + $0xe0] sm:$0xff]
        %v409 = vld [vmem:[#allocation5 + $0xe8] sm:$0xff]
        %v410 = vld [vmem:[#allocation5 + $0xf0] sm:$0xff]
        %v411 = vld [vmem:[#allocation5 + $0xf8] sm:$0xff]
        %v412 = vld [vmem:[#allocation7] sm:$0xf]
        %v414 = vlaneseq
        %v415 = vshrl.u32 %v414, 7
        %v416 = vsub.s32 0, %v415
        %v417 = vrot.slane %v412, %v416
        %v418 = vlaneseq
        %v419 = vshrl.u32 %v418, 7
        %v420 = vsub.s32 1, %v419
        %v421 = vrot.slane %v412, %v420
        %v422 = vlaneseq
        %v423 = vshrl.u32 %v422, 7
        %v424 = vsub.s32 2, %v423
        %v425 = vrot.slane %v412, %v424
        %v426 = vlaneseq
        %v427 = vshrl.u32 %v426, 7
        %v428 = vsub.s32 3, %v427
        %v429 = vrot.slane %v412, %v428
        %v466 = vunpack.c.l.b16 %v380
        %v467 = vunpack.c.h.b16 %v380
        %v468 = vunpack.c.l.b16 %v381
        %v469 = vunpack.c.h.b16 %v381
        %v470 = vunpack.c.l.b16 %v382
        %v471 = vunpack.c.h.b16 %v382
        %v472 = vunpack.c.l.b16 %v383
        %v473 = vunpack.c.h.b16 %v383
        %v474 = vunpack.c.l.b16 %v384
        %v475 = vunpack.c.h.b16 %v384
        %v476 = vunpack.c.l.b16 %v385
        %v477 = vunpack.c.h.b16 %v385
        %v478 = vunpack.c.l.b16 %v386
        %v479 = vunpack.c.h.b16 %v386
        %v480 = vunpack.c.l.b16 %v387
        %v481 = vunpack.c.h.b16 %v387
        %v482 = vunpack.c.l.b16 %v388
        %v483 = vunpack.c.h.b16 %v388
        %v484 = vunpack.c.l.b16 %v389
        %v485 = vunpack.c.h.b16 %v389
        %v486 = vunpack.c.l.b16 %v390
        %v487 = vunpack.c.h.b16 %v390
        %v488 = vunpack.c.l.b16 %v391
        %v489 = vunpack.c.h.b16 %v391
        %v490 = vunpack.c.l.b16 %v392
        %v491 = vunpack.c.h.b16 %v392
        %v492 = vunpack.c.l.b16 %v393
        %v493 = vunpack.c.h.b16 %v393
        %v494 = vunpack.c.l.b16 %v394
        %v495 = vunpack.c.h.b16 %v394
        %v496 = vunpack.c.l.b16 %v395
        %v497 = vunpack.c.h.b16 %v395
        %v498 = vunpack.c.l.b16 %v396
        %v499 = vunpack.c.h.b16 %v396
        %v500 = vunpack.c.l.b16 %v397
        %v501 = vunpack.c.h.b16 %v397
        %v502 = vunpack.c.l.b16 %v398
        %v503 = vunpack.c.h.b16 %v398
        %v504 = vunpack.c.l.b16 %v399
        %v505 = vunpack.c.h.b16 %v399
        %v506 = vunpack.c.l.b16 %v400
        %v507 = vunpack.c.h.b16 %v400
        %v508 = vunpack.c.l.b16 %v401
        %v509 = vunpack.c.h.b16 %v401
        %v510 = vunpack.c.l.b16 %v402
        %v511 = vunpack.c.h.b16 %v402
        %v512 = vunpack.c.l.b16 %v403
        %v513 = vunpack.c.h.b16 %v403
        %v514 = vunpack.c.l.b16 %v404
        %v515 = vunpack.c.h.b16 %v404
        %v516 = vunpack.c.l.b16 %v405
        %v517 = vunpack.c.h.b16 %v405
        %v518 = vunpack.c.l.b16 %v406
        %v519 = vunpack.c.h.b16 %v406
        %v520 = vunpack.c.l.b16 %v407
        %v521 = vunpack.c.h.b16 %v407
        %v522 = vunpack.c.l.b16 %v408
        %v523 = vunpack.c.h.b16 %v408
        %v524 = vunpack.c.l.b16 %v409
        %v525 = vunpack.c.h.b16 %v409
        %v526 = vunpack.c.l.b16 %v410
        %v527 = vunpack.c.h.b16 %v410
        %v528 = vunpack.c.l.b16 %v411
        %v529 = vunpack.c.h.b16 %v411
        %v530 = vpack.c.b16 %v470, %v466
        %v531 = vpack.c.b16 %v471, %v467
        %v532 = vpack.c.b16 %v472, %v468
        %v533 = vpack.c.b16 %v473, %v469
        %v534 = vpack.c.b16 %v478, %v474
        %v535 = vpack.c.b16 %v479, %v475
        %v536 = vpack.c.b16 %v480, %v476
        %v537 = vpack.c.b16 %v481, %v477
        %v538 = vpack.c.b16 %v486, %v482
        %v539 = vpack.c.b16 %v487, %v483
        %v540 = vpack.c.b16 %v488, %v484
        %v541 = vpack.c.b16 %v489, %v485
        %v542 = vpack.c.b16 %v494, %v490
        %v543 = vpack.c.b16 %v495, %v491
        %v544 = vpack.c.b16 %v496, %v492
        %v545 = vpack.c.b16 %v497, %v493
        %v546 = vpack.c.b16 %v502, %v498
        %v547 = vpack.c.b16 %v503, %v499
        %v548 = vpack.c.b16 %v504, %v500
        %v549 = vpack.c.b16 %v505, %v501
        %v550 = vpack.c.b16 %v510, %v506
        %v551 = vpack.c.b16 %v511, %v507
        %v552 = vpack.c.b16 %v512, %v508
        %v553 = vpack.c.b16 %v513, %v509
        %v554 = vpack.c.b16 %v518, %v514
        %v555 = vpack.c.b16 %v519, %v515
        %v556 = vpack.c.b16 %v520, %v516
        %v557 = vpack.c.b16 %v521, %v517
        %v558 = vpack.c.b16 %v526, %v522
        %v559 = vpack.c.b16 %v527, %v523
        %v560 = vpack.c.b16 %v528, %v524
        %v561 = vpack.c.b16 %v529, %v525
        %594 = vmatprep.subr.bf16.mxu0 %v559
        %595 = vmatpush1.bf16.msra.mxu0 %v558
        %596 = vmatprep.subr.bf16.mxu0 %v555
        %597 = vmatpush1.bf16.msra.mxu0 %v554
        %598 = vmatprep.subr.bf16.mxu0 %v551
        %599 = vmatpush1.bf16.msra.mxu0 %v550
        %600 = vmatprep.subr.bf16.mxu0 %v547
        %601 = vmatpush1.bf16.msra.mxu0 %v546
        %602 = vmatprep.subr.bf16.mxu0 %v543
        %603 = vmatpush1.bf16.msra.mxu0 %v542
        %604 = vmatprep.subr.bf16.mxu0 %v539
        %605 = vmatpush1.bf16.msra.mxu0 %v538
        %606 = vmatprep.subr.bf16.mxu0 %v535
        %607 = vmatpush1.bf16.msra.mxu0 %v534
        %608 = vmatprep.subr.bf16.mxu0 %v531
        %609 = vmatpush1.bf16.msra.mxu0 %v530
        %610 = vmatprep.subr.bf16.mxu0 0
        %611 = vmatpush2.bf16.msra.mxu0 0
        %612 = vmatprep.subr.bf16.mxu0 0
        %613 = vmatpush2.bf16.msra.mxu0 0
        %614 = vmatprep.subr.bf16.mxu0 0
        %615 = vmatpush2.bf16.msra.mxu0 0
        %616 = vmatprep.subr.bf16.mxu0 0
        %617 = vmatpush2.bf16.msra.mxu0 0
        %618 = vmatprep.subr.bf16.mxu0 0
        %619 = vmatpush2.bf16.msra.mxu0 0
        %620 = vmatprep.subr.bf16.mxu0 0
        %621 = vmatpush2.bf16.msra.mxu0 0
        %622 = vmatprep.subr.bf16.mxu0 0
        %623 = vmatpush2.bf16.msra.mxu0 0
        %624 = vmatprep.subr.bf16.mxu0 0
        %625 = vmatpush2.bf16.msra.mxu0 0
        %626 = vmatprep.mubr.bf16.mxu0 0
        %627 = vmatmul.mubr.bf16.gmra.mxu0 %v372
        %v628 = vpop.f32.mrf.mxu0
        %v629 = vadd.f32 %v417, %v628
        %v630 = vpop.f32.mrf.mxu0
        %v631 = vadd.f32 %v421, %v630
        %v632 = vpop.f32.mrf.mxu0
        %v633 = vadd.f32 %v417, %v632
        %v634 = vpop.f32.mrf.mxu0
        %v635 = vadd.f32 %v421, %v634
        %636 = vmatprep.mubr.bf16.mxu0 0
        %637 = vmatmul.mubr.bf16.gmra.mxu0 %v373
        %v638 = vpop.f32.mrf.mxu0
        %v639 = vadd.f32 %v417, %v638
        %v640 = vpop.f32.mrf.mxu0
        %v641 = vadd.f32 %v421, %v640
        %v642 = vpop.f32.mrf.mxu0
        %v643 = vadd.f32 %v417, %v642
        %v644 = vpop.f32.mrf.mxu0
        %v645 = vadd.f32 %v421, %v644
        %646 = vmatprep.mubr.bf16.mxu0 0
        %647 = vmatmul.mubr.bf16.gmra.mxu0 %v374
        %v648 = vpop.f32.mrf.mxu0
        %v649 = vadd.f32 %v417, %v648
        %v650 = vpop.f32.mrf.mxu0
        %v651 = vadd.f32 %v421, %v650
        %v652 = vpop.f32.mrf.mxu0
        %v653 = vadd.f32 %v417, %v652
        %v654 = vpop.f32.mrf.mxu0
        %v655 = vadd.f32 %v421, %v654
        %656 = vmatprep.mubr.bf16.mxu0 0
        %657 = vmatmul.mubr.bf16.gmra.mxu0 %v375
        %v658 = vpop.f32.mrf.mxu0
        %v659 = vadd.f32 %v417, %v658
        %v660 = vpop.f32.mrf.mxu0
        %v661 = vadd.f32 %v421, %v660
        %v662 = vpop.f32.mrf.mxu0
        %v663 = vadd.f32 %v417, %v662
        %v664 = vpop.f32.mrf.mxu0
        %v665 = vadd.f32 %v421, %v664
        %666 = vmatprep.mubr.bf16.mxu0 0
        %667 = vmatmul.mubr.bf16.gmra.mxu0 %v376
        %v668 = vpop.f32.mrf.mxu0
        %v669 = vadd.f32 %v417, %v668
        %v670 = vpop.f32.mrf.mxu0
        %v671 = vadd.f32 %v421, %v670
        %v672 = vpop.f32.mrf.mxu0
        %v673 = vadd.f32 %v417, %v672
        %v674 = vpop.f32.mrf.mxu0
        %v675 = vadd.f32 %v421, %v674
        %676 = vmatprep.mubr.bf16.mxu0 0
        %677 = vmatmul.mubr.bf16.gmra.mxu0 %v377
        %v678 = vpop.f32.mrf.mxu0
        %v679 = vadd.f32 %v417, %v678
        %v680 = vpop.f32.mrf.mxu0
        %v681 = vadd.f32 %v421, %v680
        %v682 = vpop.f32.mrf.mxu0
        %v683 = vadd.f32 %v417, %v682
        %v684 = vpop.f32.mrf.mxu0
        %v685 = vadd.f32 %v421, %v684
        %686 = vmatprep.mubr.bf16.mxu0 0
        %687 = vmatmul.mubr.bf16.gmra.mxu0 %v378
        %v688 = vpop.f32.mrf.mxu0
        %v689 = vadd.f32 %v417, %v688
        %v690 = vpop.f32.mrf.mxu0
        %v691 = vadd.f32 %v421, %v690
        %v692 = vpop.f32.mrf.mxu0
        %v693 = vadd.f32 %v417, %v692
        %v694 = vpop.f32.mrf.mxu0
        %v695 = vadd.f32 %v421, %v694
        %696 = vmatprep.mubr.bf16.mxu0 0
        %697 = vmatmul.mubr.bf16.gmra.mxu0 %v379
        %v698 = vpop.f32.mrf.mxu0
        %v699 = vadd.f32 %v417, %v698
        %v700 = vpop.f32.mrf.mxu0
        %v701 = vadd.f32 %v421, %v700
        %v702 = vpop.f32.mrf.mxu0
        %v703 = vadd.f32 %v417, %v702
        %v704 = vpop.f32.mrf.mxu0
        %v705 = vadd.f32 %v421, %v704
        %706 = vdwg.mxu0
        %707 = vmatprep.subr.bf16.mxu0 %v561
        %708 = vmatpush1.bf16.msra.mxu0 %v560
        %709 = vmatprep.subr.bf16.mxu0 %v557
        %710 = vmatpush1.bf16.msra.mxu0 %v556
        %711 = vmatprep.subr.bf16.mxu0 %v553
        %712 = vmatpush1.bf16.msra.mxu0 %v552
        %713 = vmatprep.subr.bf16.mxu0 %v549
        %714 = vmatpush1.bf16.msra.mxu0 %v548
        %715 = vmatprep.subr.bf16.mxu0 %v545
        %716 = vmatpush1.bf16.msra.mxu0 %v544
        %717 = vmatprep.subr.bf16.mxu0 %v541
        %718 = vmatpush1.bf16.msra.mxu0 %v540
        %719 = vmatprep.subr.bf16.mxu0 %v537
        %720 = vmatpush1.bf16.msra.mxu0 %v536
        %721 = vmatprep.subr.bf16.mxu0 %v533
        %722 = vmatpush1.bf16.msra.mxu0 %v532
        %723 = vmatprep.subr.bf16.mxu0 0
        %724 = vmatpush2.bf16.msra.mxu0 0
        %725 = vmatprep.subr.bf16.mxu0 0
        %726 = vmatpush2.bf16.msra.mxu0 0
        %727 = vmatprep.subr.bf16.mxu0 0
        %728 = vmatpush2.bf16.msra.mxu0 0
        %729 = vmatprep.subr.bf16.mxu0 0
        %730 = vmatpush2.bf16.msra.mxu0 0
        %731 = vmatprep.subr.bf16.mxu0 0
        %732 = vmatpush2.bf16.msra.mxu0 0
        %733 = vmatprep.subr.bf16.mxu0 0
        %734 = vmatpush2.bf16.msra.mxu0 0
        %735 = vmatprep.subr.bf16.mxu0 0
        %736 = vmatpush2.bf16.msra.mxu0 0
        %737 = vmatprep.subr.bf16.mxu0 0
        %738 = vmatpush2.bf16.msra.mxu0 0
        %739 = vmatprep.mubr.bf16.mxu0 0
        %740 = vmatmul.mubr.bf16.gmra.mxu0 %v372
        %v741 = vpop.f32.mrf.mxu0
        %v742 = vadd.f32 %v425, %v741
        %v743 = vpop.f32.mrf.mxu0
        %v744 = vadd.f32 %v429, %v743
        %v745 = vpop.f32.mrf.mxu0
        %v746 = vadd.f32 %v425, %v745
        %v747 = vpop.f32.mrf.mxu0
        %v748 = vadd.f32 %v429, %v747
        %749 = vmatprep.mubr.bf16.mxu0 0
        %750 = vmatmul.mubr.bf16.gmra.mxu0 %v373
        %v751 = vpop.f32.mrf.mxu0
        %v752 = vadd.f32 %v425, %v751
        %v753 = vpop.f32.mrf.mxu0
        %v754 = vadd.f32 %v429, %v753
        %v755 = vpop.f32.mrf.mxu0
        %v756 = vadd.f32 %v425, %v755
        %v757 = vpop.f32.mrf.mxu0
        %v758 = vadd.f32 %v429, %v757
        %759 = vmatprep.mubr.bf16.mxu0 0
        %760 = vmatmul.mubr.bf16.gmra.mxu0 %v374
        %v761 = vpop.f32.mrf.mxu0
        %v762 = vadd.f32 %v425, %v761
        %v763 = vpop.f32.mrf.mxu0
        %v764 = vadd.f32 %v429, %v763
        %v765 = vpop.f32.mrf.mxu0
        %v766 = vadd.f32 %v425, %v765
        %v767 = vpop.f32.mrf.mxu0
        %v768 = vadd.f32 %v429, %v767
        %769 = vmatprep.mubr.bf16.mxu0 0
        %770 = vmatmul.mubr.bf16.gmra.mxu0 %v375
        %v771 = vpop.f32.mrf.mxu0
        %v772 = vadd.f32 %v425, %v771
        %v773 = vpop.f32.mrf.mxu0
        %v774 = vadd.f32 %v429, %v773
        %v775 = vpop.f32.mrf.mxu0
        %v776 = vadd.f32 %v425, %v775
        %v777 = vpop.f32.mrf.mxu0
        %v778 = vadd.f32 %v429, %v777
        %779 = vmatprep.mubr.bf16.mxu0 0
        %780 = vmatmul.mubr.bf16.gmra.mxu0 %v376
        %v781 = vpop.f32.mrf.mxu0
        %v782 = vadd.f32 %v425, %v781
        %v783 = vpop.f32.mrf.mxu0
        %v784 = vadd.f32 %v429, %v783
        %v785 = vpop.f32.mrf.mxu0
        %v786 = vadd.f32 %v425, %v785
        %v787 = vpop.f32.mrf.mxu0
        %v788 = vadd.f32 %v429, %v787
        %789 = vmatprep.mubr.bf16.mxu0 0
        %790 = vmatmul.mubr.bf16.gmra.mxu0 %v377
        %v791 = vpop.f32.mrf.mxu0
        %v792 = vadd.f32 %v425, %v791
        %v793 = vpop.f32.mrf.mxu0
        %v794 = vadd.f32 %v429, %v793
        %v795 = vpop.f32.mrf.mxu0
        %v796 = vadd.f32 %v425, %v795
        %v797 = vpop.f32.mrf.mxu0
        %v798 = vadd.f32 %v429, %v797
        %799 = vmatprep.mubr.bf16.mxu0 0
        %800 = vmatmul.mubr.bf16.gmra.mxu0 %v378
        %v801 = vpop.f32.mrf.mxu0
        %v802 = vadd.f32 %v425, %v801
        %v803 = vpop.f32.mrf.mxu0
        %v804 = vadd.f32 %v429, %v803
        %v805 = vpop.f32.mrf.mxu0
        %v806 = vadd.f32 %v425, %v805
        %v807 = vpop.f32.mrf.mxu0
        %v808 = vadd.f32 %v429, %v807
        %809 = vmatprep.mubr.bf16.mxu0 0
        %810 = vmatmul.mubr.bf16.gmra.mxu0 %v379
        %v811 = vpop.f32.mrf.mxu0
        %v812 = vadd.f32 %v425, %v811
        %v813 = vpop.f32.mrf.mxu0
        %v814 = vadd.f32 %v429, %v813
        %v815 = vpop.f32.mrf.mxu0
        %v816 = vadd.f32 %v425, %v815
        %v817 = vpop.f32.mrf.mxu0
        %v818 = vadd.f32 %v429, %v817
        %819 = vdwg.mxu0
        %v820 = vmax.f32 %v629, 0.0
        %v821 = vmax.f32 %v631, 0.0
        %v822 = vmax.f32 %v742, 0.0
        %v823 = vmax.f32 %v744, 0.0
        %v824 = vmax.f32 %v633, 0.0
        %v825 = vmax.f32 %v635, 0.0
        %v826 = vmax.f32 %v746, 0.0
        %v827 = vmax.f32 %v748, 0.0
        %v828 = vmax.f32 %v639, 0.0
        %v829 = vmax.f32 %v641, 0.0
        %v830 = vmax.f32 %v752, 0.0
        %v831 = vmax.f32 %v754, 0.0
        %v832 = vmax.f32 %v643, 0.0
        %v833 = vmax.f32 %v645, 0.0
        %v834 = vmax.f32 %v756, 0.0
        %v835 = vmax.f32 %v758, 0.0
        %v836 = vmax.f32 %v649, 0.0
        %v837 = vmax.f32 %v651, 0.0
        %v838 = vmax.f32 %v762, 0.0
        %v839 = vmax.f32 %v764, 0.0
        %v840 = vmax.f32 %v653, 0.0
        %v841 = vmax.f32 %v655, 0.0
        %v842 = vmax.f32 %v766, 0.0
        %v843 = vmax.f32 %v768, 0.0
        %v844 = vmax.f32 %v659, 0.0
        %v845 = vmax.f32 %v661, 0.0
        %v846 = vmax.f32 %v772, 0.0
        %v847 = vmax.f32 %v774, 0.0
        %v848 = vmax.f32 %v663, 0.0
        %v849 = vmax.f32 %v665, 0.0
        %v850 = vmax.f32 %v776, 0.0
        %v851 = vmax.f32 %v778, 0.0
        %v852 = vmax.f32 %v669, 0.0
        %v853 = vmax.f32 %v671, 0.0
        %v854 = vmax.f32 %v782, 0.0
        %v855 = vmax.f32 %v784, 0.0
        %v856 = vmax.f32 %v673, 0.0
        %v857 = vmax.f32 %v675, 0.0
        %v858 = vmax.f32 %v786, 0.0
        %v859 = vmax.f32 %v788, 0.0
        %v860 = vmax.f32 %v679, 0.0
        %v861 = vmax.f32 %v681, 0.0
        %v862 = vmax.f32 %v792, 0.0
        %v863 = vmax.f32 %v794, 0.0
        %v864 = vmax.f32 %v683, 0.0
        %v865 = vmax.f32 %v685, 0.0
        %v866 = vmax.f32 %v796, 0.0
        %v867 = vmax.f32 %v798, 0.0
        %v868 = vmax.f32 %v689, 0.0
        %v869 = vmax.f32 %v691, 0.0
        %v870 = vmax.f32 %v802, 0.0
        %v871 = vmax.f32 %v804, 0.0
        %v872 = vmax.f32 %v693, 0.0
        %v873 = vmax.f32 %v695, 0.0
        %v874 = vmax.f32 %v806, 0.0
        %v875 = vmax.f32 %v808, 0.0
        %v876 = vmax.f32 %v699, 0.0
        %v877 = vmax.f32 %v701, 0.0
        %v878 = vmax.f32 %v812, 0.0
        %v879 = vmax.f32 %v814, 0.0
        %v880 = vmax.f32 %v703, 0.0
        %v881 = vmax.f32 %v705, 0.0
        %v882 = vmax.f32 %v816, 0.0
        %v883 = vmax.f32 %v818, 0.0
        %v884 = vpack.c.bf16 %v824, %v820
        %v885 = vpack.c.bf16 %v825, %v821
        %v886 = vpack.c.bf16 %v826, %v822
        %v887 = vpack.c.bf16 %v827, %v823
        %v888 = vpack.c.bf16 %v832, %v828
        %v889 = vpack.c.bf16 %v833, %v829
        %v890 = vpack.c.bf16 %v834, %v830
        %v891 = vpack.c.bf16 %v835, %v831
        %v892 = vpack.c.bf16 %v840, %v836
        %v893 = vpack.c.bf16 %v841, %v837
        %v894 = vpack.c.bf16 %v842, %v838
        %v895 = vpack.c.bf16 %v843, %v839
        %v896 = vpack.c.bf16 %v848, %v844
        %v897 = vpack.c.bf16 %v849, %v845
        %v898 = vpack.c.bf16 %v850, %v846
        %v899 = vpack.c.bf16 %v851, %v847
        %v900 = vpack.c.bf16 %v856, %v852
        %v901 = vpack.c.bf16 %v857, %v853
        %v902 = vpack.c.bf16 %v858, %v854
        %v903 = vpack.c.bf16 %v859, %v855
        %v904 = vpack.c.bf16 %v864, %v860
        %v905 = vpack.c.bf16 %v865, %v861
        %v906 = vpack.c.bf16 %v866, %v862
        %v907 = vpack.c.bf16 %v867, %v863
        %v908 = vpack.c.bf16 %v872, %v868
        %v909 = vpack.c.bf16 %v873, %v869
        %v910 = vpack.c.bf16 %v874, %v870
        %v911 = vpack.c.bf16 %v875, %v871
        %v912 = vpack.c.bf16 %v880, %v876
        %v913 = vpack.c.bf16 %v881, %v877
        %v914 = vpack.c.bf16 %v882, %v878
        %v915 = vpack.c.bf16 %v883, %v879
        %v916 = vld [vmem:[#allocation8] sm:$0xff]
        %v917 = vld [vmem:[#allocation8 + $0x8] sm:$0xf]
        %v918 = vld [vmem:[#allocation8 + $0xc] sm:$0xff]
        %v919 = vld [vmem:[#allocation8 + $0x14] sm:$0xf]
        %v920 = vld [vmem:[#allocation8 + $0x18] sm:$0xff]
        %v921 = vld [vmem:[#allocation8 + $0x20] sm:$0xf]
        %v922 = vld [vmem:[#allocation8 + $0x24] sm:$0xff]
        %v923 = vld [vmem:[#allocation8 + $0x2c] sm:$0xf]
        %v924 = vld [vmem:[#allocation8 + $0x30] sm:$0xff]
        %v925 = vld [vmem:[#allocation8 + $0x38] sm:$0xf]
        %v926 = vld [vmem:[#allocation8 + $0x3c] sm:$0xff]
        %v927 = vld [vmem:[#allocation8 + $0x44] sm:$0xf]
        %v928 = vld [vmem:[#allocation8 + $0x48] sm:$0xff]
        %v929 = vld [vmem:[#allocation8 + $0x50] sm:$0xf]
        %v930 = vld [vmem:[#allocation8 + $0x54] sm:$0xff]
        %v931 = vld [vmem:[#allocation8 + $0x5c] sm:$0xf]
        %v932 = vld [vmem:[#allocation8 + $0x60] sm:$0xff]
        %v933 = vld [vmem:[#allocation8 + $0x68] sm:$0xf]
        %v934 = vld [vmem:[#allocation8 + $0x6c] sm:$0xff]
        %v935 = vld [vmem:[#allocation8 + $0x74] sm:$0xf]
        %v936 = vld [vmem:[#allocation8 + $0x78] sm:$0xff]
        %v937 = vld [vmem:[#allocation8 + $0x80] sm:$0xf]
        %v938 = vld [vmem:[#allocation8 + $0x84] sm:$0xff]
        %v939 = vld [vmem:[#allocation8 + $0x8c] sm:$0xf]
        %v940 = vld [vmem:[#allocation8 + $0x90] sm:$0xff]
        %v941 = vld [vmem:[#allocation8 + $0x98] sm:$0xf]
        %v942 = vld [vmem:[#allocation8 + $0x9c] sm:$0xff]
        %v943 = vld [vmem:[#allocation8 + $0xa4] sm:$0xf]
        %v944 = vld [vmem:[#allocation8 + $0xa8] sm:$0xff]
        %v945 = vld [vmem:[#allocation8 + $0xb0] sm:$0xf]
        %v946 = vld [vmem:[#allocation8 + $0xb4] sm:$0xff]
        %v947 = vld [vmem:[#allocation8 + $0xbc] sm:$0xf]
        %v948 = vld [vmem:[#allocation8 + $0xc0] sm:$0xff]
        %v949 = vld [vmem:[#allocation8 + $0xc8] sm:$0xf]
        %v950 = vld [vmem:[#allocation8 + $0xcc] sm:$0xff]
        %v951 = vld [vmem:[#allocation8 + $0xd4] sm:$0xf]
        %v952 = vld [vmem:[#allocation8 + $0xd8] sm:$0xff]
        %v953 = vld [vmem:[#allocation8 + $0xe0] sm:$0xf]
        %v954 = vld [vmem:[#allocation8 + $0xe4] sm:$0xff]
        %v955 = vld [vmem:[#allocation8 + $0xec] sm:$0xf]
        %v956 = vld [vmem:[#allocation8 + $0xf0] sm:$0xff]
        %v957 = vld [vmem:[#allocation8 + $0xf8] sm:$0xf]
        %v958 = vld [vmem:[#allocation8 + $0xfc] sm:$0xff]
        %v959 = vld [vmem:[#allocation8 + $0x104] sm:$0xf]
        %v960 = vld [vmem:[#allocation8 + $0x108] sm:$0xff]
        %v961 = vld [vmem:[#allocation8 + $0x110] sm:$0xf]
        %v962 = vld [vmem:[#allocation8 + $0x114] sm:$0xff]
        %v963 = vld [vmem:[#allocation8 + $0x11c] sm:$0xf]
        %v964 = vld [vmem:[#allocation8 + $0x120] sm:$0xff]
        %v965 = vld [vmem:[#allocation8 + $0x128] sm:$0xf]
        %v966 = vld [vmem:[#allocation8 + $0x12c] sm:$0xff]
        %v967 = vld [vmem:[#allocation8 + $0x134] sm:$0xf]
        %v968 = vld [vmem:[#allocation8 + $0x138] sm:$0xff]
        %v969 = vld [vmem:[#allocation8 + $0x140] sm:$0xf]
        %v970 = vld [vmem:[#allocation8 + $0x144] sm:$0xff]
        %v971 = vld [vmem:[#allocation8 + $0x14c] sm:$0xf]
        %v972 = vld [vmem:[#allocation8 + $0x150] sm:$0xff]
        %v973 = vld [vmem:[#allocation8 + $0x158] sm:$0xf]
        %v974 = vld [vmem:[#allocation8 + $0x15c] sm:$0xff]
        %v975 = vld [vmem:[#allocation8 + $0x164] sm:$0xf]
        %v976 = vld [vmem:[#allocation8 + $0x168] sm:$0xff]
        %v977 = vld [vmem:[#allocation8 + $0x170] sm:$0xf]
        %v978 = vld [vmem:[#allocation8 + $0x174] sm:$0xff]
        %v979 = vld [vmem:[#allocation8 + $0x17c] sm:$0xf]
        %v980 = vld [vmem:[#allocation8 + $0x180] sm:$0xff]
        %v981 = vld [vmem:[#allocation8 + $0x188] sm:$0xf]
        %v982 = vld [vmem:[#allocation8 + $0x18c] sm:$0xff]
        %v983 = vld [vmem:[#allocation8 + $0x194] sm:$0xf]
        %v984 = vld [vmem:[#allocation8 + $0x198] sm:$0xff]
        %v985 = vld [vmem:[#allocation8 + $0x1a0] sm:$0xf]
        %v986 = vld [vmem:[#allocation8 + $0x1a4] sm:$0xff]
        %v987 = vld [vmem:[#allocation8 + $0x1ac] sm:$0xf]
        %v988 = vld [vmem:[#allocation8 + $0x1b0] sm:$0xff]
        %v989 = vld [vmem:[#allocation8 + $0x1b8] sm:$0xf]
        %v990 = vld [vmem:[#allocation8 + $0x1bc] sm:$0xff]
        %v991 = vld [vmem:[#allocation8 + $0x1c4] sm:$0xf]
        %v992 = vld [vmem:[#allocation8 + $0x1c8] sm:$0xff]
        %v993 = vld [vmem:[#allocation8 + $0x1d0] sm:$0xf]
        %v994 = vld [vmem:[#allocation8 + $0x1d4] sm:$0xff]
        %v995 = vld [vmem:[#allocation8 + $0x1dc] sm:$0xf]
        %v996 = vld [vmem:[#allocation8 + $0x1e0] sm:$0xff]
        %v997 = vld [vmem:[#allocation8 + $0x1e8] sm:$0xf]
        %v998 = vld [vmem:[#allocation8 + $0x1ec] sm:$0xff]
        %v999 = vld [vmem:[#allocation8 + $0x1f4] sm:$0xf]
        %v1000 = vld [vmem:[#allocation8 + $0x1f8] sm:$0xff]
        %v1001 = vld [vmem:[#allocation8 + $0x200] sm:$0xf]
        %v1002 = vld [vmem:[#allocation8 + $0x204] sm:$0xff]
        %v1003 = vld [vmem:[#allocation8 + $0x20c] sm:$0xf]
        %v1004 = vld [vmem:[#allocation8 + $0x210] sm:$0xff]
        %v1005 = vld [vmem:[#allocation8 + $0x218] sm:$0xf]
        %v1006 = vld [vmem:[#allocation8 + $0x21c] sm:$0xff]
        %v1007 = vld [vmem:[#allocation8 + $0x224] sm:$0xf]
        %v1008 = vld [vmem:[#allocation8 + $0x228] sm:$0xff]
        %v1009 = vld [vmem:[#allocation8 + $0x230] sm:$0xf]
        %v1010 = vld [vmem:[#allocation8 + $0x234] sm:$0xff]
        %v1011 = vld [vmem:[#allocation8 + $0x23c] sm:$0xf]
        %v1012 = vld [vmem:[#allocation8 + $0x240] sm:$0xff]
        %v1013 = vld [vmem:[#allocation8 + $0x248] sm:$0xf]
        %v1014 = vld [vmem:[#allocation8 + $0x24c] sm:$0xff]
        %v1015 = vld [vmem:[#allocation8 + $0x254] sm:$0xf]
        %v1016 = vld [vmem:[#allocation8 + $0x258] sm:$0xff]
        %v1017 = vld [vmem:[#allocation8 + $0x260] sm:$0xf]
        %v1018 = vld [vmem:[#allocation8 + $0x264] sm:$0xff]
        %v1019 = vld [vmem:[#allocation8 + $0x26c] sm:$0xf]
        %v1020 = vld [vmem:[#allocation8 + $0x270] sm:$0xff]
        %v1021 = vld [vmem:[#allocation8 + $0x278] sm:$0xf]
        %v1022 = vld [vmem:[#allocation8 + $0x27c] sm:$0xff]
        %v1023 = vld [vmem:[#allocation8 + $0x284] sm:$0xf]
        %v1024 = vld [vmem:[#allocation8 + $0x288] sm:$0xff]
        %v1025 = vld [vmem:[#allocation8 + $0x290] sm:$0xf]
        %v1026 = vld [vmem:[#allocation8 + $0x294] sm:$0xff]
        %v1027 = vld [vmem:[#allocation8 + $0x29c] sm:$0xf]
        %v1028 = vld [vmem:[#allocation8 + $0x2a0] sm:$0xff]
        %v1029 = vld [vmem:[#allocation8 + $0x2a8] sm:$0xf]
        %v1030 = vld [vmem:[#allocation8 + $0x2ac] sm:$0xff]
        %v1031 = vld [vmem:[#allocation8 + $0x2b4] sm:$0xf]
        %v1032 = vld [vmem:[#allocation8 + $0x2b8] sm:$0xff]
        %v1033 = vld [vmem:[#allocation8 + $0x2c0] sm:$0xf]
        %v1034 = vld [vmem:[#allocation8 + $0x2c4] sm:$0xff]
        %v1035 = vld [vmem:[#allocation8 + $0x2cc] sm:$0xf]
        %v1036 = vld [vmem:[#allocation8 + $0x2d0] sm:$0xff]
        %v1037 = vld [vmem:[#allocation8 + $0x2d8] sm:$0xf]
        %v1038 = vld [vmem:[#allocation8 + $0x2dc] sm:$0xff]
        %v1039 = vld [vmem:[#allocation8 + $0x2e4] sm:$0xf]
        %v1040 = vld [vmem:[#allocation8 + $0x2e8] sm:$0xff]
        %v1041 = vld [vmem:[#allocation8 + $0x2f0] sm:$0xf]
        %v1042 = vld [vmem:[#allocation8 + $0x2f4] sm:$0xff]
        %v1043 = vld [vmem:[#allocation8 + $0x2fc] sm:$0xf]
        %v1044 = vld [vmem:[%s4] sm:$0x7]
        %v1046 = vlaneseq
        %v1047 = vshrl.u32 %v1046, 7
        %v1048 = vsub.s32 0, %v1047
        %v1049 = vrot.slane %v1044, %v1048
        %v1050 = vlaneseq
        %v1051 = vshrl.u32 %v1050, 7
        %v1052 = vsub.s32 1, %v1051
        %v1053 = vrot.slane %v1044, %v1052
        %v1054 = vlaneseq
        %v1055 = vshrl.u32 %v1054, 7
        %v1056 = vsub.s32 2, %v1055
        %v1057 = vrot.slane %v1044, %v1056
        %v1189 = vunpack.c.l.b16 %v916
        %v1190 = vunpack.c.h.b16 %v916
        %v1191 = vunpack.c.l.b16 %v917
        %v1192 = vunpack.c.l.b16 %v918
        %v1193 = vunpack.c.h.b16 %v918
        %v1194 = vunpack.c.l.b16 %v919
        %v1195 = vunpack.c.l.b16 %v920
        %v1196 = vunpack.c.h.b16 %v920
        %v1197 = vunpack.c.l.b16 %v921
        %v1198 = vunpack.c.l.b16 %v922
        %v1199 = vunpack.c.h.b16 %v922
        %v1200 = vunpack.c.l.b16 %v923
        %v1201 = vunpack.c.l.b16 %v924
        %v1202 = vunpack.c.h.b16 %v924
        %v1203 = vunpack.c.l.b16 %v925
        %v1204 = vunpack.c.l.b16 %v926
        %v1205 = vunpack.c.h.b16 %v926
        %v1206 = vunpack.c.l.b16 %v927
        %v1207 = vunpack.c.l.b16 %v928
        %v1208 = vunpack.c.h.b16 %v928
        %v1209 = vunpack.c.l.b16 %v929
        %v1210 = vunpack.c.l.b16 %v930
        %v1211 = vunpack.c.h.b16 %v930
        %v1212 = vunpack.c.l.b16 %v931
        %v1213 = vunpack.c.l.b16 %v932
        %v1214 = vunpack.c.h.b16 %v932
        %v1215 = vunpack.c.l.b16 %v933
        %v1216 = vunpack.c.l.b16 %v934
        %v1217 = vunpack.c.h.b16 %v934
        %v1218 = vunpack.c.l.b16 %v935
        %v1219 = vunpack.c.l.b16 %v936
        %v1220 = vunpack.c.h.b16 %v936
        %v1221 = vunpack.c.l.b16 %v937
        %v1222 = vunpack.c.l.b16 %v938
        %v1223 = vunpack.c.h.b16 %v938
        %v1224 = vunpack.c.l.b16 %v939
        %v1225 = vunpack.c.l.b16 %v940
        %v1226 = vunpack.c.h.b16 %v940
        %v1227 = vunpack.c.l.b16 %v941
        %v1228 = vunpack.c.l.b16 %v942
        %v1229 = vunpack.c.h.b16 %v942
        %v1230 = vunpack.c.l.b16 %v943
        %v1231 = vunpack.c.l.b16 %v944
        %v1232 = vunpack.c.h.b16 %v944
        %v1233 = vunpack.c.l.b16 %v945
        %v1234 = vunpack.c.l.b16 %v946
        %v1235 = vunpack.c.h.b16 %v946
        %v1236 = vunpack.c.l.b16 %v947
        %v1237 = vunpack.c.l.b16 %v948
        %v1238 = vunpack.c.h.b16 %v948
        %v1239 = vunpack.c.l.b16 %v949
        %v1240 = vunpack.c.l.b16 %v950
        %v1241 = vunpack.c.h.b16 %v950
        %v1242 = vunpack.c.l.b16 %v951
        %v1243 = vunpack.c.l.b16 %v952
        %v1244 = vunpack.c.h.b16 %v952
        %v1245 = vunpack.c.l.b16 %v953
        %v1246 = vunpack.c.l.b16 %v954
        %v1247 = vunpack.c.h.b16 %v954
        %v1248 = vunpack.c.l.b16 %v955
        %v1249 = vunpack.c.l.b16 %v956
        %v1250 = vunpack.c.h.b16 %v956
        %v1251 = vunpack.c.l.b16 %v957
        %v1252 = vunpack.c.l.b16 %v958
        %v1253 = vunpack.c.h.b16 %v958
        %v1254 = vunpack.c.l.b16 %v959
        %v1255 = vunpack.c.l.b16 %v960
        %v1256 = vunpack.c.h.b16 %v960
        %v1257 = vunpack.c.l.b16 %v961
        %v1258 = vunpack.c.l.b16 %v962
        %v1259 = vunpack.c.h.b16 %v962
        %v1260 = vunpack.c.l.b16 %v963
        %v1261 = vunpack.c.l.b16 %v964
        %v1262 = vunpack.c.h.b16 %v964
        %v1263 = vunpack.c.l.b16 %v965
        %v1264 = vunpack.c.l.b16 %v966
        %v1265 = vunpack.c.h.b16 %v966
        %v1266 = vunpack.c.l.b16 %v967
        %v1267 = vunpack.c.l.b16 %v968
        %v1268 = vunpack.c.h.b16 %v968
        %v1269 = vunpack.c.l.b16 %v969
        %v1270 = vunpack.c.l.b16 %v970
        %v1271 = vunpack.c.h.b16 %v970
        %v1272 = vunpack.c.l.b16 %v971
        %v1273 = vunpack.c.l.b16 %v972
        %v1274 = vunpack.c.h.b16 %v972
        %v1275 = vunpack.c.l.b16 %v973
        %v1276 = vunpack.c.l.b16 %v974
        %v1277 = vunpack.c.h.b16 %v974
        %v1278 = vunpack.c.l.b16 %v975
        %v1279 = vunpack.c.l.b16 %v976
        %v1280 = vunpack.c.h.b16 %v976
        %v1281 = vunpack.c.l.b16 %v977
        %v1282 = vunpack.c.l.b16 %v978
        %v1283 = vunpack.c.h.b16 %v978
        %v1284 = vunpack.c.l.b16 %v979
        %v1285 = vunpack.c.l.b16 %v980
        %v1286 = vunpack.c.h.b16 %v980
        %v1287 = vunpack.c.l.b16 %v981
        %v1288 = vunpack.c.l.b16 %v982
        %v1289 = vunpack.c.h.b16 %v982
        %v1290 = vunpack.c.l.b16 %v983
        %v1291 = vunpack.c.l.b16 %v984
        %v1292 = vunpack.c.h.b16 %v984
        %v1293 = vunpack.c.l.b16 %v985
        %v1294 = vunpack.c.l.b16 %v986
        %v1295 = vunpack.c.h.b16 %v986
        %v1296 = vunpack.c.l.b16 %v987
        %v1297 = vunpack.c.l.b16 %v988
        %v1298 = vunpack.c.h.b16 %v988
        %v1299 = vunpack.c.l.b16 %v989
        %v1300 = vunpack.c.l.b16 %v990
        %v1301 = vunpack.c.h.b16 %v990
        %v1302 = vunpack.c.l.b16 %v991
        %v1303 = vunpack.c.l.b16 %v992
        %v1304 = vunpack.c.h.b16 %v992
        %v1305 = vunpack.c.l.b16 %v993
        %v1306 = vunpack.c.l.b16 %v994
        %v1307 = vunpack.c.h.b16 %v994
        %v1308 = vunpack.c.l.b16 %v995
        %v1309 = vunpack.c.l.b16 %v996
        %v1310 = vunpack.c.h.b16 %v996
        %v1311 = vunpack.c.l.b16 %v997
        %v1312 = vunpack.c.l.b16 %v998
        %v1313 = vunpack.c.h.b16 %v998
        %v1314 = vunpack.c.l.b16 %v999
        %v1315 = vunpack.c.l.b16 %v1000
        %v1316 = vunpack.c.h.b16 %v1000
        %v1317 = vunpack.c.l.b16 %v1001
        %v1318 = vunpack.c.l.b16 %v1002
        %v1319 = vunpack.c.h.b16 %v1002
        %v1320 = vunpack.c.l.b16 %v1003
        %v1321 = vunpack.c.l.b16 %v1004
        %v1322 = vunpack.c.h.b16 %v1004
        %v1323 = vunpack.c.l.b16 %v1005
        %v1324 = vunpack.c.l.b16 %v1006
        %v1325 = vunpack.c.h.b16 %v1006
        %v1326 = vunpack.c.l.b16 %v1007
        %v1327 = vunpack.c.l.b16 %v1008
        %v1328 = vunpack.c.h.b16 %v1008
        %v1329 = vunpack.c.l.b16 %v1009
        %v1330 = vunpack.c.l.b16 %v1010
        %v1331 = vunpack.c.h.b16 %v1010
        %v1332 = vunpack.c.l.b16 %v1011
        %v1333 = vunpack.c.l.b16 %v1012
        %v1334 = vunpack.c.h.b16 %v1012
        %v1335 = vunpack.c.l.b16 %v1013
        %v1336 = vunpack.c.l.b16 %v1014
        %v1337 = vunpack.c.h.b16 %v1014
        %v1338 = vunpack.c.l.b16 %v1015
        %v1339 = vunpack.c.l.b16 %v1016
        %v1340 = vunpack.c.h.b16 %v1016
        %v1341 = vunpack.c.l.b16 %v1017
        %v1342 = vunpack.c.l.b16 %v1018
        %v1343 = vunpack.c.h.b16 %v1018
        %v1344 = vunpack.c.l.b16 %v1019
        %v1345 = vunpack.c.l.b16 %v1020
        %v1346 = vunpack.c.h.b16 %v1020
        %v1347 = vunpack.c.l.b16 %v1021
        %v1348 = vunpack.c.l.b16 %v1022
        %v1349 = vunpack.c.h.b16 %v1022
        %v1350 = vunpack.c.l.b16 %v1023
        %v1351 = vunpack.c.l.b16 %v1024
        %v1352 = vunpack.c.h.b16 %v1024
        %v1353 = vunpack.c.l.b16 %v1025
        %v1354 = vunpack.c.l.b16 %v1026
        %v1355 = vunpack.c.h.b16 %v1026
        %v1356 = vunpack.c.l.b16 %v1027
        %v1357 = vunpack.c.l.b16 %v1028
        %v1358 = vunpack.c.h.b16 %v1028
        %v1359 = vunpack.c.l.b16 %v1029
        %v1360 = vunpack.c.l.b16 %v1030
        %v1361 = vunpack.c.h.b16 %v1030
        %v1362 = vunpack.c.l.b16 %v1031
        %v1363 = vunpack.c.l.b16 %v1032
        %v1364 = vunpack.c.h.b16 %v1032
        %v1365 = vunpack.c.l.b16 %v1033
        %v1366 = vunpack.c.l.b16 %v1034
        %v1367 = vunpack.c.h.b16 %v1034
        %v1368 = vunpack.c.l.b16 %v1035
        %v1369 = vunpack.c.l.b16 %v1036
        %v1370 = vunpack.c.h.b16 %v1036
        %v1371 = vunpack.c.l.b16 %v1037
        %v1372 = vunpack.c.l.b16 %v1038
        %v1373 = vunpack.c.h.b16 %v1038
        %v1374 = vunpack.c.l.b16 %v1039
        %v1375 = vunpack.c.l.b16 %v1040
        %v1376 = vunpack.c.h.b16 %v1040
        %v1377 = vunpack.c.l.b16 %v1041
        %v1378 = vunpack.c.l.b16 %v1042
        %v1379 = vunpack.c.h.b16 %v1042
        %v1380 = vunpack.c.l.b16 %v1043
        %v1381 = vpack.c.b16 %v1192, %v1189
        %v1382 = vpack.c.b16 %v1193, %v1190
        %v1383 = vpack.c.b16 %v1194, %v1191
        %v1384 = vpack.c.b16 %v1198, %v1195
        %v1385 = vpack.c.b16 %v1199, %v1196
        %v1386 = vpack.c.b16 %v1200, %v1197
        %v1387 = vpack.c.b16 %v1204, %v1201
        %v1388 = vpack.c.b16 %v1205, %v1202
        %v1389 = vpack.c.b16 %v1206, %v1203
        %v1390 = vpack.c.b16 %v1210, %v1207
        %v1391 = vpack.c.b16 %v1211, %v1208
        %v1392 = vpack.c.b16 %v1212, %v1209
        %v1393 = vpack.c.b16 %v1216, %v1213
        %v1394 = vpack.c.b16 %v1217, %v1214
        %v1395 = vpack.c.b16 %v1218, %v1215
        %v1396 = vpack.c.b16 %v1222, %v1219
        %v1397 = vpack.c.b16 %v1223, %v1220
        %v1398 = vpack.c.b16 %v1224, %v1221
        %v1399 = vpack.c.b16 %v1228, %v1225
        %v1400 = vpack.c.b16 %v1229, %v1226
        %v1401 = vpack.c.b16 %v1230, %v1227
        %v1402 = vpack.c.b16 %v1234, %v1231
        %v1403 = vpack.c.b16 %v1235, %v1232
        %v1404 = vpack.c.b16 %v1236, %v1233
        %v1405 = vpack.c.b16 %v1240, %v1237
        %v1406 = vpack.c.b16 %v1241, %v1238
        %v1407 = vpack.c.b16 %v1242, %v1239
        %v1408 = vpack.c.b16 %v1246, %v1243
        %v1409 = vpack.c.b16 %v1247, %v1244
        %v1410 = vpack.c.b16 %v1248, %v1245
        %v1411 = vpack.c.b16 %v1252, %v1249
        %v1412 = vpack.c.b16 %v1253, %v1250
        %v1413 = vpack.c.b16 %v1254, %v1251
        %v1414 = vpack.c.b16 %v1258, %v1255
        %v1415 = vpack.c.b16 %v1259, %v1256
        %v1416 = vpack.c.b16 %v1260, %v1257
        %v1417 = vpack.c.b16 %v1264, %v1261
        %v1418 = vpack.c.b16 %v1265, %v1262
        %v1419 = vpack.c.b16 %v1266, %v1263
        %v1420 = vpack.c.b16 %v1270, %v1267
        %v1421 = vpack.c.b16 %v1271, %v1268
        %v1422 = vpack.c.b16 %v1272, %v1269
        %v1423 = vpack.c.b16 %v1276, %v1273
        %v1424 = vpack.c.b16 %v1277, %v1274
        %v1425 = vpack.c.b16 %v1278, %v1275
        %v1426 = vpack.c.b16 %v1282, %v1279
        %v1427 = vpack.c.b16 %v1283, %v1280
        %v1428 = vpack.c.b16 %v1284, %v1281
        %v1429 = vpack.c.b16 %v1288, %v1285
        %v1430 = vpack.c.b16 %v1289, %v1286
        %v1431 = vpack.c.b16 %v1290, %v1287
        %v1432 = vpack.c.b16 %v1294, %v1291
        %v1433 = vpack.c.b16 %v1295, %v1292
        %v1434 = vpack.c.b16 %v1296, %v1293
        %v1435 = vpack.c.b16 %v1300, %v1297
        %v1436 = vpack.c.b16 %v1301, %v1298
        %v1437 = vpack.c.b16 %v1302, %v1299
        %v1438 = vpack.c.b16 %v1306, %v1303
        %v1439 = vpack.c.b16 %v1307, %v1304
        %v1440 = vpack.c.b16 %v1308, %v1305
        %v1441 = vpack.c.b16 %v1312, %v1309
        %v1442 = vpack.c.b16 %v1313, %v1310
        %v1443 = vpack.c.b16 %v1314, %v1311
        %v1444 = vpack.c.b16 %v1318, %v1315
        %v1445 = vpack.c.b16 %v1319, %v1316
        %v1446 = vpack.c.b16 %v1320, %v1317
        %v1447 = vpack.c.b16 %v1324, %v1321
        %v1448 = vpack.c.b16 %v1325, %v1322
        %v1449 = vpack.c.b16 %v1326, %v1323
        %v1450 = vpack.c.b16 %v1330, %v1327
        %v1451 = vpack.c.b16 %v1331, %v1328
        %v1452 = vpack.c.b16 %v1332, %v1329
        %v1453 = vpack.c.b16 %v1336, %v1333
        %v1454 = vpack.c.b16 %v1337, %v1334
        %v1455 = vpack.c.b16 %v1338, %v1335
        %v1456 = vpack.c.b16 %v1342, %v1339
        %v1457 = vpack.c.b16 %v1343, %v1340
        %v1458 = vpack.c.b16 %v1344, %v1341
        %v1459 = vpack.c.b16 %v1348, %v1345
        %v1460 = vpack.c.b16 %v1349, %v1346
        %v1461 = vpack.c.b16 %v1350, %v1347
        %v1462 = vpack.c.b16 %v1354, %v1351
        %v1463 = vpack.c.b16 %v1355, %v1352
        %v1464 = vpack.c.b16 %v1356, %v1353
        %v1465 = vpack.c.b16 %v1360, %v1357
        %v1466 = vpack.c.b16 %v1361, %v1358
        %v1467 = vpack.c.b16 %v1362, %v1359
        %v1468 = vpack.c.b16 %v1366, %v1363
        %v1469 = vpack.c.b16 %v1367, %v1364
        %v1470 = vpack.c.b16 %v1368, %v1365
        %v1471 = vpack.c.b16 %v1372, %v1369
        %v1472 = vpack.c.b16 %v1373, %v1370
        %v1473 = vpack.c.b16 %v1374, %v1371
        %v1474 = vpack.c.b16 %v1378, %v1375
        %v1475 = vpack.c.b16 %v1379, %v1376
        %v1476 = vpack.c.b16 %v1380, %v1377
        %1573 = vmatprep.subr.bf16.mxu0 %v1403
        %1574 = vmatpush1.bf16.msra.mxu0 %v1402
        %1575 = vmatprep.subr.bf16.mxu0 %v1400
        %1576 = vmatpush1.bf16.msra.mxu0 %v1399
        %1577 = vmatprep.subr.bf16.mxu0 %v1397
        %1578 = vmatpush1.bf16.msra.mxu0 %v1396
        %1579 = vmatprep.subr.bf16.mxu0 %v1394
        %1580 = vmatpush1.bf16.msra.mxu0 %v1393
        %1581 = vmatprep.subr.bf16.mxu0 %v1391
        %1582 = vmatpush1.bf16.msra.mxu0 %v1390
        %1583 = vmatprep.subr.bf16.mxu0 %v1388
        %1584 = vmatpush1.bf16.msra.mxu0 %v1387
        %1585 = vmatprep.subr.bf16.mxu0 %v1385
        %1586 = vmatpush1.bf16.msra.mxu0 %v1384
        %1587 = vmatprep.subr.bf16.mxu0 %v1382
        %1588 = vmatpush1.bf16.msra.mxu0 %v1381
        %1589 = vmatprep.subr.bf16.mxu0 %v1427
        %1590 = vmatpush2.bf16.msra.mxu0 %v1426
        %1591 = vmatprep.subr.bf16.mxu0 %v1424
        %1592 = vmatpush2.bf16.msra.mxu0 %v1423
        %1593 = vmatprep.subr.bf16.mxu0 %v1421
        %1594 = vmatpush2.bf16.msra.mxu0 %v1420
        %1595 = vmatprep.subr.bf16.mxu0 %v1418
        %1596 = vmatpush2.bf16.msra.mxu0 %v1417
        %1597 = vmatprep.subr.bf16.mxu0 %v1415
        %1598 = vmatpush2.bf16.msra.mxu0 %v1414
        %1599 = vmatprep.subr.bf16.mxu0 %v1412
        %1600 = vmatpush2.bf16.msra.mxu0 %v1411
        %1601 = vmatprep.subr.bf16.mxu0 %v1409
        %1602 = vmatpush2.bf16.msra.mxu0 %v1408
        %1603 = vmatprep.subr.bf16.mxu0 %v1406
        %1604 = vmatpush2.bf16.msra.mxu0 %v1405
        %1605 = vmatprep.mubr.bf16.mxu0 %v885
        %1606 = vmatmul.mubr.bf16.gmra.mxu0 %v884
        %v1607 = vpop.f32.mrf.mxu0
        %v1608 = vadd.f32 %v1049, %v1607
        %v1609 = vpop.f32.mrf.mxu0
        %v1610 = vadd.f32 %v1053, %v1609
        %v1611 = vpop.f32.mrf.mxu0
        %v1612 = vadd.f32 %v1049, %v1611
        %v1613 = vpop.f32.mrf.mxu0
        %v1614 = vadd.f32 %v1053, %v1613
        %1615 = vmatprep.mubr.bf16.mxu0 %v889
        %1616 = vmatmul.mubr.bf16.gmra.mxu0 %v888
        %v1617 = vpop.f32.mrf.mxu0
        %v1618 = vadd.f32 %v1049, %v1617
        %v1619 = vpop.f32.mrf.mxu0
        %v1620 = vadd.f32 %v1053, %v1619
        %v1621 = vpop.f32.mrf.mxu0
        %v1622 = vadd.f32 %v1049, %v1621
        %v1623 = vpop.f32.mrf.mxu0
        %v1624 = vadd.f32 %v1053, %v1623
        %1625 = vmatprep.mubr.bf16.mxu0 %v893
        %1626 = vmatmul.mubr.bf16.gmra.mxu0 %v892
        %v1627 = vpop.f32.mrf.mxu0
        %v1628 = vadd.f32 %v1049, %v1627
        %v1629 = vpop.f32.mrf.mxu0
        %v1630 = vadd.f32 %v1053, %v1629
        %v1631 = vpop.f32.mrf.mxu0
        %v1632 = vadd.f32 %v1049, %v1631
        %v1633 = vpop.f32.mrf.mxu0
        %v1634 = vadd.f32 %v1053, %v1633
        %1635 = vmatprep.mubr.bf16.mxu0 %v897
        %1636 = vmatmul.mubr.bf16.gmra.mxu0 %v896
        %v1637 = vpop.f32.mrf.mxu0
        %v1638 = vadd.f32 %v1049, %v1637
        %v1639 = vpop.f32.mrf.mxu0
        %v1640 = vadd.f32 %v1053, %v1639
        %v1641 = vpop.f32.mrf.mxu0
        %v1642 = vadd.f32 %v1049, %v1641
        %v1643 = vpop.f32.mrf.mxu0
        %v1644 = vadd.f32 %v1053, %v1643
        %1645 = vmatprep.mubr.bf16.mxu0 %v901
        %1646 = vmatmul.mubr.bf16.gmra.mxu0 %v900
        %v1647 = vpop.f32.mrf.mxu0
        %v1648 = vadd.f32 %v1049, %v1647
        %v1649 = vpop.f32.mrf.mxu0
        %v1650 = vadd.f32 %v1053, %v1649
        %v1651 = vpop.f32.mrf.mxu0
        %v1652 = vadd.f32 %v1049, %v1651
        %v1653 = vpop.f32.mrf.mxu0
        %v1654 = vadd.f32 %v1053, %v1653
        %1655 = vmatprep.mubr.bf16.mxu0 %v905
        %1656 = vmatmul.mubr.bf16.gmra.mxu0 %v904
        %v1657 = vpop.f32.mrf.mxu0
        %v1658 = vadd.f32 %v1049, %v1657
        %v1659 = vpop.f32.mrf.mxu0
        %v1660 = vadd.f32 %v1053, %v1659
        %v1661 = vpop.f32.mrf.mxu0
        %v1662 = vadd.f32 %v1049, %v1661
        %v1663 = vpop.f32.mrf.mxu0
        %v1664 = vadd.f32 %v1053, %v1663
        %1665 = vmatprep.mubr.bf16.mxu0 %v909
        %1666 = vmatmul.mubr.bf16.gmra.mxu0 %v908
        %v1667 = vpop.f32.mrf.mxu0
        %v1668 = vadd.f32 %v1049, %v1667
        %v1669 = vpop.f32.mrf.mxu0
        %v1670 = vadd.f32 %v1053, %v1669
        %v1671 = vpop.f32.mrf.mxu0
        %v1672 = vadd.f32 %v1049, %v1671
        %v1673 = vpop.f32.mrf.mxu0
        %v1674 = vadd.f32 %v1053, %v1673
        %1675 = vmatprep.mubr.bf16.mxu0 %v913
        %1676 = vmatmul.mubr.bf16.gmra.mxu0 %v912
        %v1677 = vpop.f32.mrf.mxu0
        %v1678 = vadd.f32 %v1049, %v1677
        %v1679 = vpop.f32.mrf.mxu0
        %v1680 = vadd.f32 %v1053, %v1679
        %v1681 = vpop.f32.mrf.mxu0
        %v1682 = vadd.f32 %v1049, %v1681
        %v1683 = vpop.f32.mrf.mxu0
        %v1684 = vadd.f32 %v1053, %v1683
        %1685 = vdwg.mxu0
        %1686 = vmatprep.subr.bf16.mxu0 %v1451
        %1687 = vmatpush1.bf16.msra.mxu0 %v1450
        %1688 = vmatprep.subr.bf16.mxu0 %v1448
        %1689 = vmatpush1.bf16.msra.mxu0 %v1447
        %1690 = vmatprep.subr.bf16.mxu0 %v1445
        %1691 = vmatpush1.bf16.msra.mxu0 %v1444
        %1692 = vmatprep.subr.bf16.mxu0 %v1442
        %1693 = vmatpush1.bf16.msra.mxu0 %v1441
        %1694 = vmatprep.subr.bf16.mxu0 %v1439
        %1695 = vmatpush1.bf16.msra.mxu0 %v1438
        %1696 = vmatprep.subr.bf16.mxu0 %v1436
        %1697 = vmatpush1.bf16.msra.mxu0 %v1435
        %1698 = vmatprep.subr.bf16.mxu0 %v1433
        %1699 = vmatpush1.bf16.msra.mxu0 %v1432
        %1700 = vmatprep.subr.bf16.mxu0 %v1430
        %1701 = vmatpush1.bf16.msra.mxu0 %v1429
        %1702 = vmatprep.subr.bf16.mxu0 %v1475
        %1703 = vmatpush2.bf16.msra.mxu0 %v1474
        %1704 = vmatprep.subr.bf16.mxu0 %v1472
        %1705 = vmatpush2.bf16.msra.mxu0 %v1471
        %1706 = vmatprep.subr.bf16.mxu0 %v1469
        %1707 = vmatpush2.bf16.msra.mxu0 %v1468
        %1708 = vmatprep.subr.bf16.mxu0 %v1466
        %1709 = vmatpush2.bf16.msra.mxu0 %v1465
        %1710 = vmatprep.subr.bf16.mxu0 %v1463
        %1711 = vmatpush2.bf16.msra.mxu0 %v1462
        %1712 = vmatprep.subr.bf16.mxu0 %v1460
        %1713 = vmatpush2.bf16.msra.mxu0 %v1459
        %1714 = vmatprep.subr.bf16.mxu0 %v1457
        %1715 = vmatpush2.bf16.msra.mxu0 %v1456
        %1716 = vmatprep.subr.bf16.mxu0 %v1454
        %1717 = vmatpush2.bf16.msra.mxu0 %v1453
        %1718 = vmatprep.mubr.bf16.mxu0 %v887
        %1719 = vmatmul.mubr.bf16.gmra.mxu0 %v886
        %v1720 = vpop.f32.mrf.mxu0
        %v1721 = vadd.f32 %v1608, %v1720
        %v1722 = vpop.f32.mrf.mxu0
        %v1723 = vadd.f32 %v1610, %v1722
        %v1724 = vpop.f32.mrf.mxu0
        %v1725 = vadd.f32 %v1612, %v1724
        %v1726 = vpop.f32.mrf.mxu0
        %v1727 = vadd.f32 %v1614, %v1726
        %1728 = vmatprep.mubr.bf16.mxu0 %v891
        %1729 = vmatmul.mubr.bf16.gmra.mxu0 %v890
        %v1730 = vpop.f32.mrf.mxu0
        %v1731 = vadd.f32 %v1618, %v1730
        %v1732 = vpop.f32.mrf.mxu0
        %v1733 = vadd.f32 %v1620, %v1732
        %v1734 = vpop.f32.mrf.mxu0
        %v1735 = vadd.f32 %v1622, %v1734
        %v1736 = vpop.f32.mrf.mxu0
        %v1737 = vadd.f32 %v1624, %v1736
        %1738 = vmatprep.mubr.bf16.mxu0 %v895
        %1739 = vmatmul.mubr.bf16.gmra.mxu0 %v894
        %v1740 = vpop.f32.mrf.mxu0
        %v1741 = vadd.f32 %v1628, %v1740
        %v1742 = vpop.f32.mrf.mxu0
        %v1743 = vadd.f32 %v1630, %v1742
        %v1744 = vpop.f32.mrf.mxu0
        %v1745 = vadd.f32 %v1632, %v1744
        %v1746 = vpop.f32.mrf.mxu0
        %v1747 = vadd.f32 %v1634, %v1746
        %1748 = vmatprep.mubr.bf16.mxu0 %v899
        %1749 = vmatmul.mubr.bf16.gmra.mxu0 %v898
        %v1750 = vpop.f32.mrf.mxu0
        %v1751 = vadd.f32 %v1638, %v1750
        %v1752 = vpop.f32.mrf.mxu0
        %v1753 = vadd.f32 %v1640, %v1752
        %v1754 = vpop.f32.mrf.mxu0
        %v1755 = vadd.f32 %v1642, %v1754
        %v1756 = vpop.f32.mrf.mxu0
        %v1757 = vadd.f32 %v1644, %v1756
        %1758 = vmatprep.mubr.bf16.mxu0 %v903
        %1759 = vmatmul.mubr.bf16.gmra.mxu0 %v902
        %v1760 = vpop.f32.mrf.mxu0
        %v1761 = vadd.f32 %v1648, %v1760
        %v1762 = vpop.f32.mrf.mxu0
        %v1763 = vadd.f32 %v1650, %v1762
        %v1764 = vpop.f32.mrf.mxu0
        %v1765 = vadd.f32 %v1652, %v1764
        %v1766 = vpop.f32.mrf.mxu0
        %v1767 = vadd.f32 %v1654, %v1766
        %1768 = vmatprep.mubr.bf16.mxu0 %v907
        %1769 = vmatmul.mubr.bf16.gmra.mxu0 %v906
        %v1770 = vpop.f32.mrf.mxu0
        %v1771 = vadd.f32 %v1658, %v1770
        %v1772 = vpop.f32.mrf.mxu0
        %v1773 = vadd.f32 %v1660, %v1772
        %v1774 = vpop.f32.mrf.mxu0
        %v1775 = vadd.f32 %v1662, %v1774
        %v1776 = vpop.f32.mrf.mxu0
        %v1777 = vadd.f32 %v1664, %v1776
        %1778 = vmatprep.mubr.bf16.mxu0 %v911
        %1779 = vmatmul.mubr.bf16.gmra.mxu0 %v910
        %v1780 = vpop.f32.mrf.mxu0
        %v1781 = vadd.f32 %v1668, %v1780
        %v1782 = vpop.f32.mrf.mxu0
        %v1783 = vadd.f32 %v1670, %v1782
        %v1784 = vpop.f32.mrf.mxu0
        %v1785 = vadd.f32 %v1672, %v1784
        %v1786 = vpop.f32.mrf.mxu0
        %v1787 = vadd.f32 %v1674, %v1786
        %1788 = vmatprep.mubr.bf16.mxu0 %v915
        %1789 = vmatmul.mubr.bf16.gmra.mxu0 %v914
        %v1790 = vpop.f32.mrf.mxu0
        %v1791 = vadd.f32 %v1678, %v1790
        %v1792 = vpop.f32.mrf.mxu0
        %v1793 = vadd.f32 %v1680, %v1792
        %v1794 = vpop.f32.mrf.mxu0
        %v1795 = vadd.f32 %v1682, %v1794
        %v1796 = vpop.f32.mrf.mxu0
        %v1797 = vadd.f32 %v1684, %v1796
        %1798 = vdwg.mxu0
        %1799 = vmatprep.subr.bf16.mxu0 0
        %1800 = vmatpush1.bf16.msra.mxu0 %v1404
        %1801 = vmatprep.subr.bf16.mxu0 0
        %1802 = vmatpush1.bf16.msra.mxu0 %v1401
        %1803 = vmatprep.subr.bf16.mxu0 0
        %1804 = vmatpush1.bf16.msra.mxu0 %v1398
        %1805 = vmatprep.subr.bf16.mxu0 0
        %1806 = vmatpush1.bf16.msra.mxu0 %v1395
        %1807 = vmatprep.subr.bf16.mxu0 0
        %1808 = vmatpush1.bf16.msra.mxu0 %v1392
        %1809 = vmatprep.subr.bf16.mxu0 0
        %1810 = vmatpush1.bf16.msra.mxu0 %v1389
        %1811 = vmatprep.subr.bf16.mxu0 0
        %1812 = vmatpush1.bf16.msra.mxu0 %v1386
        %1813 = vmatprep.subr.bf16.mxu0 0
        %1814 = vmatpush1.bf16.msra.mxu0 %v1383
        %1815 = vmatprep.subr.bf16.mxu0 0
        %1816 = vmatpush2.bf16.msra.mxu0 %v1428
        %1817 = vmatprep.subr.bf16.mxu0 0
        %1818 = vmatpush2.bf16.msra.mxu0 %v1425
        %1819 = vmatprep.subr.bf16.mxu0 0
        %1820 = vmatpush2.bf16.msra.mxu0 %v1422
        %1821 = vmatprep.subr.bf16.mxu0 0
        %1822 = vmatpush2.bf16.msra.mxu0 %v1419
        %1823 = vmatprep.subr.bf16.mxu0 0
        %1824 = vmatpush2.bf16.msra.mxu0 %v1416
        %1825 = vmatprep.subr.bf16.mxu0 0
        %1826 = vmatpush2.bf16.msra.mxu0 %v1413
        %1827 = vmatprep.subr.bf16.mxu0 0
        %1828 = vmatpush2.bf16.msra.mxu0 %v1410
        %1829 = vmatprep.subr.bf16.mxu0 0
        %1830 = vmatpush2.bf16.msra.mxu0 %v1407
        %1831 = vmatprep.mubr.bf16.mxu0 %v885
        %1832 = vmatmul.mubr.bf16.gmra.mxu0 %v884
        %v1833 = vpop.f32.mrf.mxu0
        %v1834 = vadd.f32 %v1057, %v1833
        %v1835 = vpop.f32.mrf.mxu0
        %v1836 = vpop.f32.mrf.mxu0
        %v1837 = vadd.f32 %v1057, %v1836
        %v1838 = vpop.f32.mrf.mxu0
        %1839 = vmatprep.mubr.bf16.mxu0 %v889
        %1840 = vmatmul.mubr.bf16.gmra.mxu0 %v888
        %v1841 = vpop.f32.mrf.mxu0
        %v1842 = vadd.f32 %v1057, %v1841
        %v1843 = vpop.f32.mrf.mxu0
        %v1844 = vpop.f32.mrf.mxu0
        %v1845 = vadd.f32 %v1057, %v1844
        %v1846 = vpop.f32.mrf.mxu0
        %1847 = vmatprep.mubr.bf16.mxu0 %v893
        %1848 = vmatmul.mubr.bf16.gmra.mxu0 %v892
        %v1849 = vpop.f32.mrf.mxu0
        %v1850 = vadd.f32 %v1057, %v1849
        %v1851 = vpop.f32.mrf.mxu0
        %v1852 = vpop.f32.mrf.mxu0
        %v1853 = vadd.f32 %v1057, %v1852
        %v1854 = vpop.f32.mrf.mxu0
        %1855 = vmatprep.mubr.bf16.mxu0 %v897
        %1856 = vmatmul.mubr.bf16.gmra.mxu0 %v896
        %v1857 = vpop.f32.mrf.mxu0
        %v1858 = vadd.f32 %v1057, %v1857
        %v1859 = vpop.f32.mrf.mxu0
        %v1860 = vpop.f32.mrf.mxu0
        %v1861 = vadd.f32 %v1057, %v1860
        %v1862 = vpop.f32.mrf.mxu0
        %1863 = vmatprep.mubr.bf16.mxu0 %v901
        %1864 = vmatmul.mubr.bf16.gmra.mxu0 %v900
        %v1865 = vpop.f32.mrf.mxu0
        %v1866 = vadd.f32 %v1057, %v1865
        %v1867 = vpop.f32.mrf.mxu0
        %v1868 = vpop.f32.mrf.mxu0
        %v1869 = vadd.f32 %v1057, %v1868
        %v1870 = vpop.f32.mrf.mxu0
        %1871 = vmatprep.mubr.bf16.mxu0 %v905
        %1872 = vmatmul.mubr.bf16.gmra.mxu0 %v904
        %v1873 = vpop.f32.mrf.mxu0
        %v1874 = vadd.f32 %v1057, %v1873
        %v1875 = vpop.f32.mrf.mxu0
        %v1876 = vpop.f32.mrf.mxu0
        %v1877 = vadd.f32 %v1057, %v1876
        %v1878 = vpop.f32.mrf.mxu0
        %1879 = vmatprep.mubr.bf16.mxu0 %v909
        %1880 = vmatmul.mubr.bf16.gmra.mxu0 %v908
        %v1881 = vpop.f32.mrf.mxu0
        %v1882 = vadd.f32 %v1057, %v1881
        %v1883 = vpop.f32.mrf.mxu0
        %v1884 = vpop.f32.mrf.mxu0
        %v1885 = vadd.f32 %v1057, %v1884
        %v1886 = vpop.f32.mrf.mxu0
        %1887 = vmatprep.mubr.bf16.mxu0 %v913
        %1888 = vmatmul.mubr.bf16.gmra.mxu0 %v912
        %v1889 = vpop.f32.mrf.mxu0
        %v1890 = vadd.f32 %v1057, %v1889
        %v1891 = vpop.f32.mrf.mxu0
        %v1892 = vpop.f32.mrf.mxu0
        %v1893 = vadd.f32 %v1057, %v1892
        %v1894 = vpop.f32.mrf.mxu0
        %1895 = vdwg.mxu0
        %1896 = vmatprep.subr.bf16.mxu0 0
        %1897 = vmatpush1.bf16.msra.mxu0 %v1452
        %1898 = vmatprep.subr.bf16.mxu0 0
        %1899 = vmatpush1.bf16.msra.mxu0 %v1449
        %1900 = vmatprep.subr.bf16.mxu0 0
        %1901 = vmatpush1.bf16.msra.mxu0 %v1446
        %1902 = vmatprep.subr.bf16.mxu0 0
        %1903 = vmatpush1.bf16.msra.mxu0 %v1443
        %1904 = vmatprep.subr.bf16.mxu0 0
        %1905 = vmatpush1.bf16.msra.mxu0 %v1440
        %1906 = vmatprep.subr.bf16.mxu0 0
        %1907 = vmatpush1.bf16.msra.mxu0 %v1437
        %1908 = vmatprep.subr.bf16.mxu0 0
        %1909 = vmatpush1.bf16.msra.mxu0 %v1434
        %1910 = vmatprep.subr.bf16.mxu0 0
        %1911 = vmatpush1.bf16.msra.mxu0 %v1431
        %1912 = vmatprep.subr.bf16.mxu0 0
        %1913 = vmatpush2.bf16.msra.mxu0 %v1476
        %1914 = vmatprep.subr.bf16.mxu0 0
        %1915 = vmatpush2.bf16.msra.mxu0 %v1473
        %1916 = vmatprep.subr.bf16.mxu0 0
        %1917 = vmatpush2.bf16.msra.mxu0 %v1470
        %1918 = vmatprep.subr.bf16.mxu0 0
        %1919 = vmatpush2.bf16.msra.mxu0 %v1467
        %1920 = vmatprep.subr.bf16.mxu0 0
        %1921 = vmatpush2.bf16.msra.mxu0 %v1464
        %1922 = vmatprep.subr.bf16.mxu0 0
        %1923 = vmatpush2.bf16.msra.mxu0 %v1461
        %1924 = vmatprep.subr.bf16.mxu0 0
        %1925 = vmatpush2.bf16.msra.mxu0 %v1458
        %1926 = vmatprep.subr.bf16.mxu0 0
        %1927 = vmatpush2.bf16.msra.mxu0 %v1455
        %1928 = vmatprep.mubr.bf16.mxu0 %v887
        %1929 = vmatmul.mubr.bf16.gmra.mxu0 %v886
        %v1930 = vpop.f32.mrf.mxu0
        %v1931 = vadd.f32 %v1834, %v1930
        %v1932 = vpop.f32.mrf.mxu0
        %v1933 = vpop.f32.mrf.mxu0
        %v1934 = vadd.f32 %v1837, %v1933
        %v1935 = vpop.f32.mrf.mxu0
        %1936 = vmatprep.mubr.bf16.mxu0 %v891
        %1937 = vmatmul.mubr.bf16.gmra.mxu0 %v890
        %v1938 = vpop.f32.mrf.mxu0
        %v1939 = vadd.f32 %v1842, %v1938
        %v1940 = vpop.f32.mrf.mxu0
        %v1941 = vpop.f32.mrf.mxu0
        %v1942 = vadd.f32 %v1845, %v1941
        %v1943 = vpop.f32.mrf.mxu0
        %1944 = vmatprep.mubr.bf16.mxu0 %v895
        %1945 = vmatmul.mubr.bf16.gmra.mxu0 %v894
        %v1946 = vpop.f32.mrf.mxu0
        %v1947 = vadd.f32 %v1850, %v1946
        %v1948 = vpop.f32.mrf.mxu0
        %v1949 = vpop.f32.mrf.mxu0
        %v1950 = vadd.f32 %v1853, %v1949
        %v1951 = vpop.f32.mrf.mxu0
        %1952 = vmatprep.mubr.bf16.mxu0 %v899
        %1953 = vmatmul.mubr.bf16.gmra.mxu0 %v898
        %v1954 = vpop.f32.mrf.mxu0
        %v1955 = vadd.f32 %v1858, %v1954
        %v1956 = vpop.f32.mrf.mxu0
        %v1957 = vpop.f32.mrf.mxu0
        %v1958 = vadd.f32 %v1861, %v1957
        %v1959 = vpop.f32.mrf.mxu0
        %1960 = vmatprep.mubr.bf16.mxu0 %v903
        %1961 = vmatmul.mubr.bf16.gmra.mxu0 %v902
        %v1962 = vpop.f32.mrf.mxu0
        %v1963 = vadd.f32 %v1866, %v1962
        %v1964 = vpop.f32.mrf.mxu0
        %v1965 = vpop.f32.mrf.mxu0
        %v1966 = vadd.f32 %v1869, %v1965
        %v1967 = vpop.f32.mrf.mxu0
        %1968 = vmatprep.mubr.bf16.mxu0 %v907
        %1969 = vmatmul.mubr.bf16.gmra.mxu0 %v906
        %v1970 = vpop.f32.mrf.mxu0
        %v1971 = vadd.f32 %v1874, %v1970
        %v1972 = vpop.f32.mrf.mxu0
        %v1973 = vpop.f32.mrf.mxu0
        %v1974 = vadd.f32 %v1877, %v1973
        %v1975 = vpop.f32.mrf.mxu0
        %1976 = vmatprep.mubr.bf16.mxu0 %v911
        %1977 = vmatmul.mubr.bf16.gmra.mxu0 %v910
        %v1978 = vpop.f32.mrf.mxu0
        %v1979 = vadd.f32 %v1882, %v1978
        %v1980 = vpop.f32.mrf.mxu0
        %v1981 = vpop.f32.mrf.mxu0
        %v1982 = vadd.f32 %v1885, %v1981
        %v1983 = vpop.f32.mrf.mxu0
        %1984 = vmatprep.mubr.bf16.mxu0 %v915
        %1985 = vmatmul.mubr.bf16.gmra.mxu0 %v914
        %v1986 = vpop.f32.mrf.mxu0
        %v1987 = vadd.f32 %v1890, %v1986
        %v1988 = vpop.f32.mrf.mxu0
        %v1989 = vpop.f32.mrf.mxu0
        %v1990 = vadd.f32 %v1893, %v1989
        %v1991 = vpop.f32.mrf.mxu0
        %1992 = vdwg.mxu0
        %v1993 = vmax.f32 %v1721, 0.0
        %v1994 = vmax.f32 %v1723, 0.0
        %v1995 = vmax.f32 %v1931, 0.0
        %v1996 = vmax.f32 %v1725, 0.0
        %v1997 = vmax.f32 %v1727, 0.0
        %v1998 = vmax.f32 %v1934, 0.0
        %v1999 = vmax.f32 %v1731, 0.0
        %v2000 = vmax.f32 %v1733, 0.0
        %v2001 = vmax.f32 %v1939, 0.0
        %v2002 = vmax.f32 %v1735, 0.0
        %v2003 = vmax.f32 %v1737, 0.0
        %v2004 = vmax.f32 %v1942, 0.0
        %v2005 = vmax.f32 %v1741, 0.0
        %v2006 = vmax.f32 %v1743, 0.0
        %v2007 = vmax.f32 %v1947, 0.0
        %v2008 = vmax.f32 %v1745, 0.0
        %v2009 = vmax.f32 %v1747, 0.0
        %v2010 = vmax.f32 %v1950, 0.0
        %v2011 = vmax.f32 %v1751, 0.0
        %v2012 = vmax.f32 %v1753, 0.0
        %v2013 = vmax.f32 %v1955, 0.0
        %v2014 = vmax.f32 %v1755, 0.0
        %v2015 = vmax.f32 %v1757, 0.0
        %v2016 = vmax.f32 %v1958, 0.0
        %v2017 = vmax.f32 %v1761, 0.0
        %v2018 = vmax.f32 %v1763, 0.0
        %v2019 = vmax.f32 %v1963, 0.0
        %v2020 = vmax.f32 %v1765, 0.0
        %v2021 = vmax.f32 %v1767, 0.0
        %v2022 = vmax.f32 %v1966, 0.0
        %v2023 = vmax.f32 %v1771, 0.0
        %v2024 = vmax.f32 %v1773, 0.0
        %v2025 = vmax.f32 %v1971, 0.0
        %v2026 = vmax.f32 %v1775, 0.0
        %v2027 = vmax.f32 %v1777, 0.0
        %v2028 = vmax.f32 %v1974, 0.0
        %v2029 = vmax.f32 %v1781, 0.0
        %v2030 = vmax.f32 %v1783, 0.0
        %v2031 = vmax.f32 %v1979, 0.0
        %v2032 = vmax.f32 %v1785, 0.0
        %v2033 = vmax.f32 %v1787, 0.0
        %v2034 = vmax.f32 %v1982, 0.0
        %v2035 = vmax.f32 %v1791, 0.0
        %v2036 = vmax.f32 %v1793, 0.0
        %v2037 = vmax.f32 %v1987, 0.0
        %v2038 = vmax.f32 %v1795, 0.0
        %v2039 = vmax.f32 %v1797, 0.0
        %v2040 = vmax.f32 %v1990, 0.0
        %v2041 = vpack.c.bf16 %v1996, %v1993
        %v2042 = vpack.c.bf16 %v1997, %v1994
        %v2043 = vpack.c.bf16 %v1998, %v1995
        %v2044 = vpack.c.bf16 %v2002, %v1999
        %v2045 = vpack.c.bf16 %v2003, %v2000
        %v2046 = vpack.c.bf16 %v2004, %v2001
        %v2047 = vpack.c.bf16 %v2008, %v2005
        %v2048 = vpack.c.bf16 %v2009, %v2006
        %v2049 = vpack.c.bf16 %v2010, %v2007
        %v2050 = vpack.c.bf16 %v2014, %v2011
        %v2051 = vpack.c.bf16 %v2015, %v2012
        %v2052 = vpack.c.bf16 %v2016, %v2013
        %v2053 = vpack.c.bf16 %v2020, %v2017
        %v2054 = vpack.c.bf16 %v2021, %v2018
        %v2055 = vpack.c.bf16 %v2022, %v2019
        %v2056 = vpack.c.bf16 %v2026, %v2023
        %v2057 = vpack.c.bf16 %v2027, %v2024
        %v2058 = vpack.c.bf16 %v2028, %v2025
        %v2059 = vpack.c.bf16 %v2032, %v2029
        %v2060 = vpack.c.bf16 %v2033, %v2030
        %v2061 = vpack.c.bf16 %v2034, %v2031
        %v2062 = vpack.c.bf16 %v2038, %v2035
        %v2063 = vpack.c.bf16 %v2039, %v2036
        %v2064 = vpack.c.bf16 %v2040, %v2037
        %v2065 = vld [vmem:[#allocation10] sm:$0xf]
        %v2066 = vld [vmem:[#allocation10 + $0x4] sm:$0xf]
        %v2067 = vld [vmem:[#allocation10 + $0x8] sm:$0xf]
        %v2068 = vld [vmem:[#allocation10 + $0xc] sm:$0xf]
        %v2069 = vld [vmem:[#allocation10 + $0x10] sm:$0xf]
        %v2070 = vld [vmem:[#allocation10 + $0x14] sm:$0xf]
        %v2071 = vld [vmem:[#allocation10 + $0x18] sm:$0xf]
        %v2072 = vld [vmem:[#allocation10 + $0x1c] sm:$0xf]
        %v2073 = vld [vmem:[#allocation10 + $0x20] sm:$0xf]
        %v2074 = vld [vmem:[#allocation10 + $0x24] sm:$0xf]
        %v2075 = vld [vmem:[#allocation10 + $0x28] sm:$0xf]
        %v2076 = vld [vmem:[#allocation10 + $0x2c] sm:$0xf]
        %v2077 = vld [vmem:[#allocation10 + $0x30] sm:$0xf]
        %v2078 = vld [vmem:[#allocation10 + $0x34] sm:$0xf]
        %v2079 = vld [vmem:[#allocation10 + $0x38] sm:$0xf]
        %v2080 = vld [vmem:[#allocation10 + $0x3c] sm:$0xf]
        %v2081 = vld [vmem:[#allocation10 + $0x40] sm:$0xf]
        %v2082 = vld [vmem:[#allocation10 + $0x44] sm:$0xf]
        %v2083 = vld [vmem:[#allocation10 + $0x48] sm:$0xf]
        %v2084 = vld [vmem:[#allocation10 + $0x4c] sm:$0xf]
        %v2085 = vld [vmem:[#allocation10 + $0x50] sm:$0xf]
        %v2086 = vld [vmem:[#allocation10 + $0x54] sm:$0xf]
        %v2087 = vld [vmem:[#allocation10 + $0x58] sm:$0xf]
        %v2088 = vld [vmem:[#allocation10 + $0x5c] sm:$0xf]
        %v2089 = vld [vmem:[#allocation10 + $0x60] sm:$0xf]
        %v2090 = vld [vmem:[#allocation10 + $0x64] sm:$0xf]
        %v2091 = vld [vmem:[#allocation10 + $0x68] sm:$0xf]
        %v2092 = vld [vmem:[#allocation10 + $0x6c] sm:$0xf]
        %v2093 = vld [vmem:[#allocation10 + $0x70] sm:$0xf]
        %v2094 = vld [vmem:[#allocation10 + $0x74] sm:$0xf]
        %v2095 = vld [vmem:[#allocation10 + $0x78] sm:$0xf]
        %v2096 = vld [vmem:[#allocation10 + $0x7c] sm:$0xf]
        %v2097 = vld [vmem:[#allocation10 + $0x80] sm:$0xf]
        %v2098 = vld [vmem:[#allocation10 + $0x84] sm:$0xf]
        %v2099 = vld [vmem:[#allocation10 + $0x88] sm:$0xf]
        %v2100 = vld [vmem:[#allocation10 + $0x8c] sm:$0xf]
        %v2101 = vld [vmem:[#allocation10 + $0x90] sm:$0xf]
        %v2102 = vld [vmem:[#allocation10 + $0x94] sm:$0xf]
        %v2103 = vld [vmem:[#allocation10 + $0x98] sm:$0xf]
        %v2104 = vld [vmem:[#allocation10 + $0x9c] sm:$0xf]
        %v2105 = vld [vmem:[#allocation10 + $0xa0] sm:$0xf]
        %v2106 = vld [vmem:[#allocation10 + $0xa4] sm:$0xf]
        %v2107 = vld [vmem:[#allocation10 + $0xa8] sm:$0xf]
        %v2108 = vld [vmem:[#allocation10 + $0xac] sm:$0xf]
        %v2109 = vld [vmem:[#allocation10 + $0xb0] sm:$0xf]
        %v2110 = vld [vmem:[#allocation10 + $0xb4] sm:$0xf]
        %v2111 = vld [vmem:[#allocation10 + $0xb8] sm:$0xf]
        %v2112 = vld [vmem:[#allocation10 + $0xbc] sm:$0xf]
        %v2113 = vld [vmem:[%s6] sm:$0x1]
        %v2115 = vlaneseq
        %v2116 = vshrl.u32 %v2115, 7
        %v2117 = vsub.s32 0, %v2116
        %v2118 = vrot.slane %v2113, %v2117
        %v2168 = vunpack.c.l.b16 %v2065
        %v2169 = vunpack.c.l.b16 %v2066
        %v2170 = vunpack.c.l.b16 %v2067
        %v2171 = vunpack.c.l.b16 %v2068
        %v2172 = vunpack.c.l.b16 %v2069
        %v2173 = vunpack.c.l.b16 %v2070
        %v2174 = vunpack.c.l.b16 %v2071
        %v2175 = vunpack.c.l.b16 %v2072
        %v2176 = vunpack.c.l.b16 %v2073
        %v2177 = vunpack.c.l.b16 %v2074
        %v2178 = vunpack.c.l.b16 %v2075
        %v2179 = vunpack.c.l.b16 %v2076
        %v2180 = vunpack.c.l.b16 %v2077
        %v2181 = vunpack.c.l.b16 %v2078
        %v2182 = vunpack.c.l.b16 %v2079
        %v2183 = vunpack.c.l.b16 %v2080
        %v2184 = vunpack.c.l.b16 %v2081
        %v2185 = vunpack.c.l.b16 %v2082
        %v2186 = vunpack.c.l.b16 %v2083
        %v2187 = vunpack.c.l.b16 %v2084
        %v2188 = vunpack.c.l.b16 %v2085
        %v2189 = vunpack.c.l.b16 %v2086
        %v2190 = vunpack.c.l.b16 %v2087
        %v2191 = vunpack.c.l.b16 %v2088
        %v2192 = vunpack.c.l.b16 %v2089
        %v2193 = vunpack.c.l.b16 %v2090
        %v2194 = vunpack.c.l.b16 %v2091
        %v2195 = vunpack.c.l.b16 %v2092
        %v2196 = vunpack.c.l.b16 %v2093
        %v2197 = vunpack.c.l.b16 %v2094
        %v2198 = vunpack.c.l.b16 %v2095
        %v2199 = vunpack.c.l.b16 %v2096
        %v2200 = vunpack.c.l.b16 %v2097
        %v2201 = vunpack.c.l.b16 %v2098
        %v2202 = vunpack.c.l.b16 %v2099
        %v2203 = vunpack.c.l.b16 %v2100
        %v2204 = vunpack.c.l.b16 %v2101
        %v2205 = vunpack.c.l.b16 %v2102
        %v2206 = vunpack.c.l.b16 %v2103
        %v2207 = vunpack.c.l.b16 %v2104
        %v2208 = vunpack.c.l.b16 %v2105
        %v2209 = vunpack.c.l.b16 %v2106
        %v2210 = vunpack.c.l.b16 %v2107
        %v2211 = vunpack.c.l.b16 %v2108
        %v2212 = vunpack.c.l.b16 %v2109
        %v2213 = vunpack.c.l.b16 %v2110
        %v2214 = vunpack.c.l.b16 %v2111
        %v2215 = vunpack.c.l.b16 %v2112
        %v2216 = vpack.c.b16 %v2169, %v2168
        %v2217 = vpack.c.b16 %v2171, %v2170
        %v2218 = vpack.c.b16 %v2173, %v2172
        %v2219 = vpack.c.b16 %v2175, %v2174
        %v2220 = vpack.c.b16 %v2177, %v2176
        %v2221 = vpack.c.b16 %v2179, %v2178
        %v2222 = vpack.c.b16 %v2181, %v2180
        %v2223 = vpack.c.b16 %v2183, %v2182
        %v2224 = vpack.c.b16 %v2185, %v2184
        %v2225 = vpack.c.b16 %v2187, %v2186
        %v2226 = vpack.c.b16 %v2189, %v2188
        %v2227 = vpack.c.b16 %v2191, %v2190
        %v2228 = vpack.c.b16 %v2193, %v2192
        %v2229 = vpack.c.b16 %v2195, %v2194
        %v2230 = vpack.c.b16 %v2197, %v2196
        %v2231 = vpack.c.b16 %v2199, %v2198
        %v2232 = vpack.c.b16 %v2201, %v2200
        %v2233 = vpack.c.b16 %v2203, %v2202
        %v2234 = vpack.c.b16 %v2205, %v2204
        %v2235 = vpack.c.b16 %v2207, %v2206
        %v2236 = vpack.c.b16 %v2209, %v2208
        %v2237 = vpack.c.b16 %v2211, %v2210
        %v2238 = vpack.c.b16 %v2213, %v2212
        %v2239 = vpack.c.b16 %v2215, %v2214
        %2264 = vmatprep.subr.bf16.mxu0 0
        %2265 = vmatpush1.bf16.msra.mxu0 %v2223
        %2266 = vmatprep.subr.bf16.mxu0 0
        %2267 = vmatpush1.bf16.msra.mxu0 %v2222
        %2268 = vmatprep.subr.bf16.mxu0 0
        %2269 = vmatpush1.bf16.msra.mxu0 %v2221
        %2270 = vmatprep.subr.bf16.mxu0 0
        %2271 = vmatpush1.bf16.msra.mxu0 %v2220
        %2272 = vmatprep.subr.bf16.mxu0 0
        %2273 = vmatpush1.bf16.msra.mxu0 %v2219
        %2274 = vmatprep.subr.bf16.mxu0 0
        %2275 = vmatpush1.bf16.msra.mxu0 %v2218
        %2276 = vmatprep.subr.bf16.mxu0 0
        %2277 = vmatpush1.bf16.msra.mxu0 %v2217
        %2278 = vmatprep.subr.bf16.mxu0 0
        %2279 = vmatpush1.bf16.msra.mxu0 %v2216
        %2280 = vmatprep.subr.bf16.mxu0 0
        %2281 = vmatpush2.bf16.msra.mxu0 %v2231
        %2282 = vmatprep.subr.bf16.mxu0 0
        %2283 = vmatpush2.bf16.msra.mxu0 %v2230
        %2284 = vmatprep.subr.bf16.mxu0 0
        %2285 = vmatpush2.bf16.msra.mxu0 %v2229
        %2286 = vmatprep.subr.bf16.mxu0 0
        %2287 = vmatpush2.bf16.msra.mxu0 %v2228
        %2288 = vmatprep.subr.bf16.mxu0 0
        %2289 = vmatpush2.bf16.msra.mxu0 %v2227
        %2290 = vmatprep.subr.bf16.mxu0 0
        %2291 = vmatpush2.bf16.msra.mxu0 %v2226
        %2292 = vmatprep.subr.bf16.mxu0 0
        %2293 = vmatpush2.bf16.msra.mxu0 %v2225
        %2294 = vmatprep.subr.bf16.mxu0 0
        %2295 = vmatpush2.bf16.msra.mxu0 %v2224
        %2296 = vmatprep.mubr.bf16.mxu0 %v2042
        %2297 = vmatmul.mubr.bf16.gmra.mxu0 %v2041
        %v2298 = vpop.f32.mrf.mxu0
        %v2299 = vadd.f32 %v2118, %v2298
        %v2300 = vpop.f32.mrf.mxu0
        %v2301 = vpop.f32.mrf.mxu0
        %v2302 = vadd.f32 %v2118, %v2301
        %v2303 = vpop.f32.mrf.mxu0
        %2304 = vmatprep.mubr.bf16.mxu0 %v2045
        %2305 = vmatmul.mubr.bf16.gmra.mxu0 %v2044
        %v2306 = vpop.f32.mrf.mxu0
        %v2307 = vadd.f32 %v2118, %v2306
        %v2308 = vpop.f32.mrf.mxu0
        %v2309 = vpop.f32.mrf.mxu0
        %v2310 = vadd.f32 %v2118, %v2309
        %v2311 = vpop.f32.mrf.mxu0
        %2312 = vmatprep.mubr.bf16.mxu0 %v2048
        %2313 = vmatmul.mubr.bf16.gmra.mxu0 %v2047
        %v2314 = vpop.f32.mrf.mxu0
        %v2315 = vadd.f32 %v2118, %v2314
        %v2316 = vpop.f32.mrf.mxu0
        %v2317 = vpop.f32.mrf.mxu0
        %v2318 = vadd.f32 %v2118, %v2317
        %v2319 = vpop.f32.mrf.mxu0
        %2320 = vmatprep.mubr.bf16.mxu0 %v2051
        %2321 = vmatmul.mubr.bf16.gmra.mxu0 %v2050
        %v2322 = vpop.f32.mrf.mxu0
        %v2323 = vadd.f32 %v2118, %v2322
        %v2324 = vpop.f32.mrf.mxu0
        %v2325 = vpop.f32.mrf.mxu0
        %v2326 = vadd.f32 %v2118, %v2325
        %v2327 = vpop.f32.mrf.mxu0
        %2328 = vmatprep.mubr.bf16.mxu0 %v2054
        %2329 = vmatmul.mubr.bf16.gmra.mxu0 %v2053
        %v2330 = vpop.f32.mrf.mxu0
        %v2331 = vadd.f32 %v2118, %v2330
        %v2332 = vpop.f32.mrf.mxu0
        %v2333 = vpop.f32.mrf.mxu0
        %v2334 = vadd.f32 %v2118, %v2333
        %v2335 = vpop.f32.mrf.mxu0
        %2336 = vmatprep.mubr.bf16.mxu0 %v2057
        %2337 = vmatmul.mubr.bf16.gmra.mxu0 %v2056
        %v2338 = vpop.f32.mrf.mxu0
        %v2339 = vadd.f32 %v2118, %v2338
        %v2340 = vpop.f32.mrf.mxu0
        %v2341 = vpop.f32.mrf.mxu0
        %v2342 = vadd.f32 %v2118, %v2341
        %v2343 = vpop.f32.mrf.mxu0
        %2344 = vmatprep.mubr.bf16.mxu0 %v2060
        %2345 = vmatmul.mubr.bf16.gmra.mxu0 %v2059
        %v2346 = vpop.f32.mrf.mxu0
        %v2347 = vadd.f32 %v2118, %v2346
        %v2348 = vpop.f32.mrf.mxu0
        %v2349 = vpop.f32.mrf.mxu0
        %v2350 = vadd.f32 %v2118, %v2349
        %v2351 = vpop.f32.mrf.mxu0
        %2352 = vmatprep.mubr.bf16.mxu0 %v2063
        %2353 = vmatmul.mubr.bf16.gmra.mxu0 %v2062
        %v2354 = vpop.f32.mrf.mxu0
        %v2355 = vadd.f32 %v2118, %v2354
        %v2356 = vpop.f32.mrf.mxu0
        %v2357 = vpop.f32.mrf.mxu0
        %v2358 = vadd.f32 %v2118, %v2357
        %v2359 = vpop.f32.mrf.mxu0
        %2360 = vdwg.mxu0
        %2361 = vmatprep.subr.bf16.mxu0 0
        %2362 = vmatpush1.bf16.msra.mxu0 %v2239
        %2363 = vmatprep.subr.bf16.mxu0 0
        %2364 = vmatpush1.bf16.msra.mxu0 %v2238
        %2365 = vmatprep.subr.bf16.mxu0 0
        %2366 = vmatpush1.bf16.msra.mxu0 %v2237
        %2367 = vmatprep.subr.bf16.mxu0 0
        %2368 = vmatpush1.bf16.msra.mxu0 %v2236
        %2369 = vmatprep.subr.bf16.mxu0 0
        %2370 = vmatpush1.bf16.msra.mxu0 %v2235
        %2371 = vmatprep.subr.bf16.mxu0 0
        %2372 = vmatpush1.bf16.msra.mxu0 %v2234
        %2373 = vmatprep.subr.bf16.mxu0 0
        %2374 = vmatpush1.bf16.msra.mxu0 %v2233
        %2375 = vmatprep.subr.bf16.mxu0 0
        %2376 = vmatpush1.bf16.msra.mxu0 %v2232
        %2377 = vmatprep.subr.bf16.mxu0 0
        %2378 = vmatpush2.bf16.msra.mxu0 0
        %2379 = vmatprep.subr.bf16.mxu0 0
        %2380 = vmatpush2.bf16.msra.mxu0 0
        %2381 = vmatprep.subr.bf16.mxu0 0
        %2382 = vmatpush2.bf16.msra.mxu0 0
        %2383 = vmatprep.subr.bf16.mxu0 0
        %2384 = vmatpush2.bf16.msra.mxu0 0
        %2385 = vmatprep.subr.bf16.mxu0 0
        %2386 = vmatpush2.bf16.msra.mxu0 0
        %2387 = vmatprep.subr.bf16.mxu0 0
        %2388 = vmatpush2.bf16.msra.mxu0 0
        %2389 = vmatprep.subr.bf16.mxu0 0
        %2390 = vmatpush2.bf16.msra.mxu0 0
        %2391 = vmatprep.subr.bf16.mxu0 0
        %2392 = vmatpush2.bf16.msra.mxu0 0
        %2393 = vmatprep.mubr.bf16.mxu0 0
        %2394 = vmatmul.mubr.bf16.gmra.mxu0 %v2043
        %v2395 = vpop.f32.mrf.mxu0
        %v2396 = vadd.f32 %v2299, %v2395
        %v2397 = vpop.f32.mrf.mxu0
        %v2398 = vpop.f32.mrf.mxu0
        %v2399 = vadd.f32 %v2302, %v2398
        %v2400 = vpop.f32.mrf.mxu0
        %2401 = vmatprep.mubr.bf16.mxu0 0
        %2402 = vmatmul.mubr.bf16.gmra.mxu0 %v2046
        %v2403 = vpop.f32.mrf.mxu0
        %v2404 = vadd.f32 %v2307, %v2403
        %v2405 = vpop.f32.mrf.mxu0
        %v2406 = vpop.f32.mrf.mxu0
        %v2407 = vadd.f32 %v2310, %v2406
        %v2408 = vpop.f32.mrf.mxu0
        %2409 = vmatprep.mubr.bf16.mxu0 0
        %2410 = vmatmul.mubr.bf16.gmra.mxu0 %v2049
        %v2411 = vpop.f32.mrf.mxu0
        %v2412 = vadd.f32 %v2315, %v2411
        %v2413 = vpop.f32.mrf.mxu0
        %v2414 = vpop.f32.mrf.mxu0
        %v2415 = vadd.f32 %v2318, %v2414
        %v2416 = vpop.f32.mrf.mxu0
        %2417 = vmatprep.mubr.bf16.mxu0 0
        %2418 = vmatmul.mubr.bf16.gmra.mxu0 %v2052
        %v2419 = vpop.f32.mrf.mxu0
        %v2420 = vadd.f32 %v2323, %v2419
        %v2421 = vpop.f32.mrf.mxu0
        %v2422 = vpop.f32.mrf.mxu0
        %v2423 = vadd.f32 %v2326, %v2422
        %v2424 = vpop.f32.mrf.mxu0
        %2425 = vmatprep.mubr.bf16.mxu0 0
        %2426 = vmatmul.mubr.bf16.gmra.mxu0 %v2055
        %v2427 = vpop.f32.mrf.mxu0
        %v2428 = vadd.f32 %v2331, %v2427
        %v2429 = vpop.f32.mrf.mxu0
        %v2430 = vpop.f32.mrf.mxu0
        %v2431 = vadd.f32 %v2334, %v2430
        %v2432 = vpop.f32.mrf.mxu0
        %2433 = vmatprep.mubr.bf16.mxu0 0
        %2434 = vmatmul.mubr.bf16.gmra.mxu0 %v2058
        %v2435 = vpop.f32.mrf.mxu0
        %v2436 = vadd.f32 %v2339, %v2435
        %v2437 = vpop.f32.mrf.mxu0
        %v2438 = vpop.f32.mrf.mxu0
        %v2439 = vadd.f32 %v2342, %v2438
        %v2440 = vpop.f32.mrf.mxu0
        %2441 = vmatprep.mubr.bf16.mxu0 0
        %2442 = vmatmul.mubr.bf16.gmra.mxu0 %v2061
        %v2443 = vpop.f32.mrf.mxu0
        %v2444 = vadd.f32 %v2347, %v2443
        %v2445 = vpop.f32.mrf.mxu0
        %v2446 = vpop.f32.mrf.mxu0
        %v2447 = vadd.f32 %v2350, %v2446
        %v2448 = vpop.f32.mrf.mxu0
        %2449 = vmatprep.mubr.bf16.mxu0 0
        %2450 = vmatmul.mubr.bf16.gmra.mxu0 %v2064
        %v2451 = vpop.f32.mrf.mxu0
        %v2452 = vadd.f32 %v2355, %v2451
        %v2453 = vpop.f32.mrf.mxu0
        %v2454 = vpop.f32.mrf.mxu0
        %v2455 = vadd.f32 %v2358, %v2454
        %v2456 = vpop.f32.mrf.mxu0
        %2457 = vdwg.mxu0
        %v2458 = vtanh.pop %v2396
        %v2459 = vtanh.pop %v2399
        %v2460 = vtanh.pop %v2404
        %v2461 = vtanh.pop %v2407
        %v2462 = vtanh.pop %v2412
        %v2463 = vtanh.pop %v2415
        %v2464 = vtanh.pop %v2420
        %v2465 = vtanh.pop %v2423
        %v2466 = vtanh.pop %v2428
        %v2467 = vtanh.pop %v2431
        %v2468 = vtanh.pop %v2436
        %v2469 = vtanh.pop %v2439
        %v2470 = vtanh.pop %v2444
        %v2471 = vtanh.pop %v2447
        %v2472 = vtanh.pop %v2452
        %v2473 = vtanh.pop %v2455
        %2474 = vst [vmem:[%s352] sm:$0xff] %v2458
        %2475 = vst [vmem:[%s352 + $0x8] sm:$0xff] %v2459
        %2476 = vst [vmem:[%s352 + $0x10] sm:$0xff] %v2460
        %2477 = vst [vmem:[%s352 + $0x18] sm:$0xff] %v2461
        %2478 = vst [vmem:[%s352 + $0x20] sm:$0xff] %v2462
        %2479 = vst [vmem:[%s352 + $0x28] sm:$0xff] %v2463
        %2480 = vst [vmem:[%s352 + $0x30] sm:$0xff] %v2464
        %2481 = vst [vmem:[%s352 + $0x38] sm:$0xff] %v2465
        %2482 = vst [vmem:[%s352 + $0x40] sm:$0xff] %v2466
        %2483 = vst [vmem:[%s352 + $0x48] sm:$0xff] %v2467
        %2484 = vst [vmem:[%s352 + $0x50] sm:$0xff] %v2468
        %2485 = vst [vmem:[%s352 + $0x58] sm:$0xff] %v2469
        %2486 = vst [vmem:[%s352 + $0x60] sm:$0xff] %v2470
        %2487 = vst [vmem:[%s352 + $0x68] sm:$0xff] %v2471
        %2488 = vst [vmem:[%s352 + $0x70] sm:$0xff] %v2472
        %2489 = vst [vmem:[%s352 + $0x78] sm:$0xff] %v2473
        %s2490 = sand.u32 %s186, 1
        %s2491 = scalar_lea.sflag [#allocation4], %s2490
        %s2492 = sand.u32 %s186, 1
        %s2493 = smul.addr %s2492, 128
        %s2494 = scalar_lea.vmem [#allocation11], %s2493
        // Predicated region
        $region69: #{tpu_custom_call.1} parent=47 // pred_check
          %p2495 = pneg %p196
        $region70: #{tpu_custom_call.1} parent=47 // pred_check_branch
          %2497 = sbr.rel (%p2495) target = $region72
        $region71: #{tpu_custom_call.1} parent=47 // pred_region
          %s2498 = smul.u32 16, %s26
          %s2500 = ssub.s32 2048, 2048
          %2501 = vsyncadd %s2491, %s2500
          %s2502 = smul.addr %s2498, 128
          %s2503 = scalar_lea.hbm %s7, %s2502
          %s2504 = sshll.u32 %s2494, 4
          %s2505 = int_to_ptr.vmem [resolvable:$true] %s2504
          %2510 = dma.vmem_to_hbm [thread:$0]  %s2505, 2048, %s2503, %s2491, 128, 128, 8
        $region72: #{tpu_custom_call.1} parent=47 // pred_fallthru
          _
      $region48: #{tpu_custom_call.1} parent=5 // pred_fallthru
        _
      %p2511 = scmp.le.s32.totalorder 2, %s21
      // Predicated region
      $region73: #{tpu_custom_call.1} parent=5 // pred_check
        %p2512 = pneg %p2511
      $region74: #{tpu_custom_call.1} parent=5 // pred_check_branch
        %2514 = sbr.rel (%p2512) target = $region76
      $region75: #{tpu_custom_call.1} parent=5 // pred_region
        %s2515 = ssub.s32 %s21, 2
        // Predicated region
        $region77: #{tpu_custom_call.1} parent=75 // pred_check
          %p2516 = pneg %p202
        $region78: #{tpu_custom_call.1} parent=75 // pred_check_branch
          %2518 = sbr.rel (%p2516) target = $region80
        $region79: #{tpu_custom_call.1} parent=75 // pred_region
          %s2519 = sand.u32 %s187, 1
          %s2520 = scalar_lea.sflag [#allocation4], %s2519
          %s2521 = sand.u32 %s187, 1
          %s2522 = smul.addr %s2521, 128
          %s2523 = scalar_lea.vmem [#allocation11], %s2522
          %2524 = dma.done %s2520, 2048
        $region80: #{tpu_custom_call.1} parent=75 // pred_fallthru
          _
      $region76: #{tpu_custom_call.1} parent=5 // pred_fallthru
        _
    $region6: #{tpu_custom_call.1} parent=1 // loop_footer
      %s25 = sadd.s32 1, %s21
    $region7: #{tpu_custom_call.1} parent=1 // loop_footer_branch
      %20 = sbr.rel target = $region3
    $region8: #{tpu_custom_call.1} parent=1 // loop_exit
      _
    %2525 = vsyncpa [#allocation3], 1
    %s2526 = scalar_lea.sflag [#allocation3], 1
    %2527 = vsyncpa %s2526, 1
    %2528 = vsyncpa [#allocation6], 1
    %2529 = vsyncpa [#allocation9], 1
    %2530 = vsyncpa [#allocation4], 1
    %s2531 = scalar_lea.sflag [#allocation4], 1
    %2532 = vsyncpa %s2531, 1

</llo_original>
